<compile_context>
chip_gen: v6e
topology: v6e:2x2x1
jax: 0.10.0
libtpu: 0.0.40
codegen_flags: <defaults>
</compile_context>

<pallas_src>
import jax
import jax.numpy as jnp
from jax.experimental import pallas as pl
from jax.experimental.pallas import tpu as pltpu

RESNET_OUT_DIM = 512        # resnet18.fc.in_features
HIDDEN1 = 256
HIDDEN2 = 128
EXTRA_PAD = 128             # loc(2) + time_of_day(4), zero-padded to one 128-lane group


def _round_up(x, m):
    return ((x + m - 1) // m) * m


def _invariant_spec(shape):
    """Grid-invariant operand: block == full array, block index 0 every step.

    NOTE: these stay (default) double-buffered, ~0.5 MB total; pl.Buffered(1)
    would single-buffer them but is omitted for portability -- negligible after
    the feature-path fixes.
    """
    n = len(shape)
    return pl.BlockSpec(shape, lambda i, n=n: (0,) * n)


def _classifier_kernel(feat_ref, extra_ref,
                       w1i_ref, w1e_ref, b1_ref, w2_ref, b2_ref, w3_ref, b3_ref,
                       out_ref):
    # Backbone tail: AdaptiveAvgPool2d((1,1)) + view(B, -1) == mean over the
    # leading spatial axis.  Fully unrolled bf16-load -> f32-add chain (S is a
    # small static block dim): accumulates in f32 without materializing an f32
    # copy of the whole block and without any cross-lane work.
    s_len, tb, c = feat_ref.shape
    acc = jnp.zeros((tb, c), jnp.float32)
    for s in range(s_len):
        acc = acc + feat_ref[s].astype(jnp.float32)
    pooled = acc * (1.0 / s_len)                                       # [TB, 512] f32

    # torch.cat((x_img, location, time_of_day), 1) @ W1 without the concat:
    # image half on the MXU in bf16; the tiny extras half stays f32 for accuracy.
    h1 = jnp.dot(pooled.astype(jnp.bfloat16), w1i_ref[...],
                 preferred_element_type=jnp.float32)
    h1 = h1 + jnp.dot(extra_ref[...], w1e_ref[...],
                      preferred_element_type=jnp.float32)
    h1 = jnp.maximum(h1 + b1_ref[...], 0.0)                            # ReLU
    # Dropout(p=0.2): identity in eval mode.

    h2 = (jnp.dot(h1.astype(jnp.bfloat16), w2_ref[...],
                  preferred_element_type=jnp.float32) + b2_ref[...])
    h2 = jnp.maximum(h2, 0.0)                                          # ReLU
    # Dropout(p=0.2): identity in eval mode.

    out_ref[...] = (jnp.dot(h2.astype(jnp.bfloat16), w3_ref[...],
                            preferred_element_type=jnp.float32) + b3_ref[...])


def init_params(key, num_classes):
    """Deterministic init matching nn.Linear default (U[-1/sqrt(fan_in), +])."""
    in_dim = RESNET_OUT_DIM + 2 + 4          # 518
    pad_out = _round_up(num_classes, 128)    # lane-dense output width (sliced back later)
    k = jax.random.split(key, 6)

    def linear_init(kw, kb, fan_in, fan_out):
        bound = 1.0 / jnp.sqrt(jnp.float32(fan_in))
        w = jax.random.uniform(kw, (fan_in, fan_out), jnp.float32, -bound, bound)
        b = jax.random.uniform(kb, (1, fan_out), jnp.float32, -bound, bound)
        return w, b

    w1, b1 = linear_init(k[0], k[1], in_dim, HIDDEN1)       # [518, 256]
    w2, b2 = linear_init(k[2], k[3], HIDDEN1, HIDDEN2)      # [256, 128]
    w3, b3 = linear_init(k[4], k[5], HIDDEN2, num_classes)  # [128, nc]

    # Split W1: image rows [0:512] (bf16, MXU path); extra rows [512:518] go to
    # rows [0:6] of a zero-padded f32 [128, 256] slice (location/time stay f32).
    w1_img = w1[:RESNET_OUT_DIM]
    w1_extra = jnp.zeros((EXTRA_PAD, HIDDEN1), jnp.float32).at[:6].set(w1[RESNET_OUT_DIM:])
    # Output projection zero-padded to a lane-dense width.
    w3p = jnp.zeros((HIDDEN2, pad_out), jnp.float32).at[:, :num_classes].set(w3)
    b3p = jnp.zeros((1, pad_out), jnp.float32).at[:, :num_classes].set(b3)

    # Big weights in bf16 (MXU-native, half the HBM bytes); biases + extras f32.
    return dict(w1_img=w1_img.astype(jnp.bfloat16), w1_extra=w1_extra, b1=b1,
                w2=w2.astype(jnp.bfloat16), b2=b2,
                w3=w3p.astype(jnp.bfloat16), b3=b3p,
                num_classes=num_classes)


def animal_classifier_forward(feat_sbc, location, time_of_day, params, *,
                              tile_b=128, vmem_limit_bytes=None):
    """feat_sbc: [S = Hf*Wf, B, 512] ResNet18 layer4 features, channels-last with
    the spatial axis leading (preferably bf16) -- consumed as-is, no HBM
    transpose/relayout is performed here.  location: [B, 2].  time_of_day: [4]
    (broadcast over the batch, generalizing the original module's .unsqueeze(0),
    which only type-checks for B == 1)."""
    S, B, C = feat_sbc.shape
    assert C == RESNET_OUT_DIM

    # Extras lane group: [loc(2), tod(4), zeros(122)] -> [B, 128], kept in f32
    # so lat/long-scale values don't lose precision (bf16 keeps ~3 digits).
    loc = location.astype(jnp.float32)
    tod = jnp.broadcast_to(time_of_day.astype(jnp.float32)[None, :], (B, 4))
    extra = (jnp.zeros((B, EXTRA_PAD), jnp.float32)
             .at[:, :2].set(loc).at[:, 2:6].set(tod))

    # Batch tile: multiple of 16 (bf16 sublane packing); pad B up only if needed.
    tile_b = min(_round_up(tile_b, 16), _round_up(B, 16))
    b_pad = _round_up(B, tile_b)
    if b_pad != B:
        feat_sbc = jnp.pad(feat_sbc, ((0, 0), (0, b_pad - B), (0, 0)))
        extra = jnp.pad(extra, ((0, b_pad - B), (0, 0)))

    weights = (params["w1_img"], params["w1_extra"], params["b1"],
               params["w2"], params["b2"], params["w3"], params["b3"])
    pad_out = params["w3"].shape[1]

    out = pl.pallas_call(
        _classifier_kernel,
        out_shape=jax.ShapeDtypeStruct((b_pad, pad_out), jnp.float32),
        grid=(b_pad // tile_b,),
        in_specs=[pl.BlockSpec((S, tile_b, C), lambda i: (0, i, 0)),
                  pl.BlockSpec((tile_b, EXTRA_PAD), lambda i: (i, 0))]
                 + [_invariant_spec(w.shape) for w in weights],
        out_specs=pl.BlockSpec((tile_b, pad_out), lambda i: (i, 0)),
        compiler_params=pltpu.CompilerParams(
            # Batch tiles shard across TensorCores on v7x.
            dimension_semantics=("parallel",),
            # Defaults suffice for tile_b=128 after the layout/pooling fixes
            # (~6.4 MB/step at S=49); raise only if a larger tile is forced
            # (e.g. tile_b=256 on v6e), or drop to tile_b=64 on v5e.
            vmem_limit_bytes=vmem_limit_bytes),
    )(feat_sbc, extra, *weights)
    return out[:B, :params["num_classes"]]


def _reference_forward(feat_sbc, location, time_of_day, params):
    """Pure-JAX reference mirroring the PyTorch forward (same mixed precision)."""
    S, B, C = feat_sbc.shape
    pooled = jnp.mean(feat_sbc.astype(jnp.float32), axis=0)              # [B, 512]
    tod = jnp.broadcast_to(time_of_day.astype(jnp.float32)[None, :], (B, 4))
    extra = (jnp.zeros((B, EXTRA_PAD), jnp.float32)
             .at[:, :2].set(location.astype(jnp.float32)).at[:, 2:6].set(tod))
    h1 = (jnp.dot(pooled.astype(jnp.bfloat16), params["w1_img"],
                  preferred_element_type=jnp.float32)
          + jnp.dot(extra, params["w1_extra"], preferred_element_type=jnp.float32)
          + params["b1"])
    h1 = jnp.maximum(h1, 0.0)
    h2 = jnp.maximum(jnp.dot(h1.astype(jnp.bfloat16), params["w2"],
                             preferred_element_type=jnp.float32) + params["b2"], 0.0)
    out = (jnp.dot(h2.astype(jnp.bfloat16), params["w3"],
                   preferred_element_type=jnp.float32) + params["b3"])
    return out[:, :params["num_classes"]]


if __name__ == "__main__":
    key = jax.random.PRNGKey(0)
    k_feat, k_loc, k_tod, k_param = jax.random.split(key, 4)

    # Small demo shapes: a 64x64 image gives a 2x2 layer4 feature map (S = 4).
    B, Hf, Wf = 32, 2, 2
    S = Hf * Wf
    num_classes = 10

    # Layer4 features already channels-last with spatial leading, in bf16 --
    # the layout/dtype the backbone should emit so this head pays no extra
    # HBM transpose or cast pass.
    feat = jax.random.normal(
        k_feat, (S, B, RESNET_OUT_DIM), jnp.float32).astype(jnp.bfloat16)
    # Lat/long-scale magnitudes: kept f32 end-to-end inside the kernel.
    location = jax.random.normal(k_loc, (B, 2), jnp.float32) * 100.0
    time_of_day = jax.random.normal(k_tod, (4,), jnp.float32)

    params = init_params(k_param, num_classes)

    # tile_b=16 so the demo exercises a multi-step batch grid
    # (weights stay VMEM-resident across grid steps).
    out = animal_classifier_forward(feat, location, time_of_day, params, tile_b=16)
    out = jax.block_until_ready(out)

    ref = _reference_forward(feat, location, time_of_day, params)
    assert out.shape == (B, num_classes)
    assert jnp.allclose(out, ref, atol=2e-3, rtol=2e-3), "mismatch vs reference"

    print("KERNEL_OK")
</pallas_src>

<mosaic_0001>
module attributes {stable_mosaic.version = 11 : i64} {
  func.func @_classifier_kernel(%arg0: i32, %arg1: memref<4x16x512xbf16, #tpu.memory_space<vmem>>, %arg2: memref<16x128xf32, #tpu.memory_space<vmem>>, %arg3: memref<512x256xbf16, #tpu.memory_space<vmem>>, %arg4: memref<128x256xf32, #tpu.memory_space<vmem>>, %arg5: memref<1x256xf32, #tpu.memory_space<vmem>>, %arg6: memref<256x128xbf16, #tpu.memory_space<vmem>>, %arg7: memref<1x128xf32, #tpu.memory_space<vmem>>, %arg8: memref<128x128xbf16, #tpu.memory_space<vmem>>, %arg9: memref<1x128xf32, #tpu.memory_space<vmem>>, %arg10: memref<16x128xf32, #tpu.memory_space<vmem>>) attributes {dimension_semantics = [#tpu.dimension_semantics<parallel>], iteration_bounds = array<i64: 2>, scalar_prefetch = 0 : i64, scratch_operands = 0 : i64, tpu.core_type = #tpu.core_type<tc>, window_params = [{transform_indices = @transform_0, window_bounds = array<i64: 4, 16, 512>}, {transform_indices = @transform_1, window_bounds = array<i64: 16, 128>}, {pipeline_mode = #tpu.pipeline_mode<synchronous>, transform_indices = @transform_2, window_bounds = array<i64: 512, 256>}, {pipeline_mode = #tpu.pipeline_mode<synchronous>, transform_indices = @transform_3, window_bounds = array<i64: 128, 256>}, {pipeline_mode = #tpu.pipeline_mode<synchronous>, transform_indices = @transform_4, window_bounds = array<i64: 1, 256>}, {pipeline_mode = #tpu.pipeline_mode<synchronous>, transform_indices = @transform_5, window_bounds = array<i64: 256, 128>}, {pipeline_mode = #tpu.pipeline_mode<synchronous>, transform_indices = @transform_6, window_bounds = array<i64: 1, 128>}, {pipeline_mode = #tpu.pipeline_mode<synchronous>, transform_indices = @transform_7, window_bounds = array<i64: 128, 128>}, {pipeline_mode = #tpu.pipeline_mode<synchronous>, transform_indices = @transform_8, window_bounds = array<i64: 1, 128>}, {transform_indices = @transform_9, window_bounds = array<i64: 16, 128>}]} {
    %cst = arith.constant 0.000000e+00 : f32
    %0 = vector.broadcast %cst : f32 to vector<16x512xf32>
    %c0 = arith.constant 0 : index
    %c0_0 = arith.constant 0 : index
    %c0_1 = arith.constant 0 : index
    %1 = vector.load %arg1[%c0, %c0_0, %c0_1] : memref<4x16x512xbf16, #tpu.memory_space<vmem>>, vector<1x16x512xbf16>
    %2 = vector.shape_cast %1 : vector<1x16x512xbf16> to vector<16x512xbf16>
    %3 = arith.extf %2 : vector<16x512xbf16> to vector<16x512xf32>
    %4 = arith.addf %0, %3 : vector<16x512xf32>
    %c1 = arith.constant 1 : index
    %c0_2 = arith.constant 0 : index
    %c0_3 = arith.constant 0 : index
    %5 = vector.load %arg1[%c1, %c0_2, %c0_3] : memref<4x16x512xbf16, #tpu.memory_space<vmem>>, vector<1x16x512xbf16>
    %6 = vector.shape_cast %5 : vector<1x16x512xbf16> to vector<16x512xbf16>
    %7 = arith.extf %6 : vector<16x512xbf16> to vector<16x512xf32>
    %8 = arith.addf %4, %7 : vector<16x512xf32>
    %c2 = arith.constant 2 : index
    %c0_4 = arith.constant 0 : index
    %c0_5 = arith.constant 0 : index
    %9 = vector.load %arg1[%c2, %c0_4, %c0_5] : memref<4x16x512xbf16, #tpu.memory_space<vmem>>, vector<1x16x512xbf16>
    %10 = vector.shape_cast %9 : vector<1x16x512xbf16> to vector<16x512xbf16>
    %11 = arith.extf %10 : vector<16x512xbf16> to vector<16x512xf32>
    %12 = arith.addf %8, %11 : vector<16x512xf32>
    %c3 = arith.constant 3 : index
    %c0_6 = arith.constant 0 : index
    %c0_7 = arith.constant 0 : index
    %13 = vector.load %arg1[%c3, %c0_6, %c0_7] : memref<4x16x512xbf16, #tpu.memory_space<vmem>>, vector<1x16x512xbf16>
    %14 = vector.shape_cast %13 : vector<1x16x512xbf16> to vector<16x512xbf16>
    %15 = arith.extf %14 : vector<16x512xbf16> to vector<16x512xf32>
    %16 = arith.addf %12, %15 : vector<16x512xf32>
    %cst_8 = arith.constant 2.500000e-01 : f32
    %17 = vector.broadcast %cst_8 : f32 to vector<16x512xf32>
    %18 = arith.mulf %16, %17 : vector<16x512xf32>
    %19 = arith.truncf %18 : vector<16x512xf32> to vector<16x512xbf16>
    %c0_9 = arith.constant 0 : index
    %c0_10 = arith.constant 0 : index
    %20 = vector.load %arg3[%c0_9, %c0_10] : memref<512x256xbf16, #tpu.memory_space<vmem>>, vector<512x256xbf16>
    %cst_11 = arith.constant dense<0.000000e+00> : vector<16x256xf32>
    %21 = tpu.matmul %19, %20, %cst_11 {dimension_numbers = #tpu.dot_dimension_numbers<[1], [0], [0], [1], [0, 0, 1, 1], [], []>} : vector<16x512xbf16>, vector<512x256xbf16>, vector<16x256xf32> -> vector<16x256xf32>
    %c0_12 = arith.constant 0 : index
    %c0_13 = arith.constant 0 : index
    %22 = vector.load %arg2[%c0_12, %c0_13] : memref<16x128xf32, #tpu.memory_space<vmem>>, vector<16x128xf32>
    %c0_14 = arith.constant 0 : index
    %c0_15 = arith.constant 0 : index
    %23 = vector.load %arg4[%c0_14, %c0_15] : memref<128x256xf32, #tpu.memory_space<vmem>>, vector<128x256xf32>
    %cst_16 = arith.constant dense<0.000000e+00> : vector<16x256xf32>
    %24 = tpu.matmul %22, %23, %cst_16 {dimension_numbers = #tpu.dot_dimension_numbers<[1], [0], [0], [1], [0, 0, 1, 1], [], []>} : vector<16x128xf32>, vector<128x256xf32>, vector<16x256xf32> -> vector<16x256xf32>
    %25 = arith.addf %21, %24 : vector<16x256xf32>
    %c0_17 = arith.constant 0 : index
    %c0_18 = arith.constant 0 : index
    %26 = vector.load %arg5[%c0_17, %c0_18] : memref<1x256xf32, #tpu.memory_space<vmem>>, vector<1x256xf32>
    %27 = vector.broadcast %26 : vector<1x256xf32> to vector<16x256xf32>
    %28 = arith.addf %25, %27 : vector<16x256xf32>
    %cst_19 = arith.constant 0.000000e+00 : f32
    %29 = vector.broadcast %cst_19 : f32 to vector<16x256xf32>
    %30 = arith.maximumf %28, %29 : vector<16x256xf32>
    %31 = arith.truncf %30 : vector<16x256xf32> to vector<16x256xbf16>
    %c0_20 = arith.constant 0 : index
    %c0_21 = arith.constant 0 : index
    %32 = vector.load %arg6[%c0_20, %c0_21] : memref<256x128xbf16, #tpu.memory_space<vmem>>, vector<256x128xbf16>
    %cst_22 = arith.constant dense<0.000000e+00> : vector<16x128xf32>
    %33 = tpu.matmul %31, %32, %cst_22 {dimension_numbers = #tpu.dot_dimension_numbers<[1], [0], [0], [1], [0, 0, 1, 1], [], []>} : vector<16x256xbf16>, vector<256x128xbf16>, vector<16x128xf32> -> vector<16x128xf32>
    %c0_23 = arith.constant 0 : index
    %c0_24 = arith.constant 0 : index
    %34 = vector.load %arg7[%c0_23, %c0_24] : memref<1x128xf32, #tpu.memory_space<vmem>>, vector<1x128xf32>
    %35 = vector.broadcast %34 : vector<1x128xf32> to vector<16x128xf32>
    %36 = arith.addf %33, %35 : vector<16x128xf32>
    %cst_25 = arith.constant 0.000000e+00 : f32
    %37 = vector.broadcast %cst_25 : f32 to vector<16x128xf32>
    %38 = arith.maximumf %36, %37 : vector<16x128xf32>
    %39 = arith.truncf %38 : vector<16x128xf32> to vector<16x128xbf16>
    %c0_26 = arith.constant 0 : index
    %c0_27 = arith.constant 0 : index
    %40 = vector.load %arg8[%c0_26, %c0_27] : memref<128x128xbf16, #tpu.memory_space<vmem>>, vector<128x128xbf16>
    %cst_28 = arith.constant dense<0.000000e+00> : vector<16x128xf32>
    %41 = tpu.matmul %39, %40, %cst_28 {dimension_numbers = #tpu.dot_dimension_numbers<[1], [0], [0], [1], [0, 0, 1, 1], [], []>} : vector<16x128xbf16>, vector<128x128xbf16>, vector<16x128xf32> -> vector<16x128xf32>
    %c0_29 = arith.constant 0 : index
    %c0_30 = arith.constant 0 : index
    %42 = vector.load %arg9[%c0_29, %c0_30] : memref<1x128xf32, #tpu.memory_space<vmem>>, vector<1x128xf32>
    %43 = vector.broadcast %42 : vector<1x128xf32> to vector<16x128xf32>
    %44 = arith.addf %41, %43 : vector<16x128xf32>
    %c0_31 = arith.constant 0 : index
    %c0_32 = arith.constant 0 : index
    %45 = vector.load %arg10[%c0_31, %c0_32] : memref<16x128xf32, #tpu.memory_space<vmem>>, vector<16x128xf32>
    tpu.vector_store %arg10[%c0_31, %c0_32], %44 {strides = array<i32>} : memref<16x128xf32, #tpu.memory_space<vmem>>, vector<16x128xf32>,
    return
  }
  func.func @transform_0(%arg0: i32) -> (i32, i32, i32) {
    %c0_i32 = arith.constant 0 : i32
    %c0_i32_0 = arith.constant 0 : i32
    %c0_i32_1 = arith.constant 0 : i32
    return %c0_i32, %arg0, %c0_i32_0 : i32, i32, i32
  }
  func.func @transform_1(%arg0: i32) -> (i32, i32) {
    %c0_i32 = arith.constant 0 : i32
    %c0_i32_0 = arith.constant 0 : i32
    return %arg0, %c0_i32 : i32, i32
  }
  func.func @transform_2(%arg0: i32) -> (i32, i32) {
    %c0_i32 = arith.constant 0 : i32
    %c0_i32_0 = arith.constant 0 : i32
    %c0_i32_1 = arith.constant 0 : i32
    return %c0_i32, %c0_i32_0 : i32, i32
  }
  func.func @transform_3(%arg0: i32) -> (i32, i32) {
    %c0_i32 = arith.constant 0 : i32
    %c0_i32_0 = arith.constant 0 : i32
    %c0_i32_1 = arith.constant 0 : i32
    return %c0_i32, %c0_i32_0 : i32, i32
  }
  func.func @transform_4(%arg0: i32) -> (i32, i32) {
    %c0_i32 = arith.constant 0 : i32
    %c0_i32_0 = arith.constant 0 : i32
    %c0_i32_1 = arith.constant 0 : i32
    return %c0_i32, %c0_i32_0 : i32, i32
  }
  func.func @transform_5(%arg0: i32) -> (i32, i32) {
    %c0_i32 = arith.constant 0 : i32
    %c0_i32_0 = arith.constant 0 : i32
    %c0_i32_1 = arith.constant 0 : i32
    return %c0_i32, %c0_i32_0 : i32, i32
  }
  func.func @transform_6(%arg0: i32) -> (i32, i32) {
    %c0_i32 = arith.constant 0 : i32
    %c0_i32_0 = arith.constant 0 : i32
    %c0_i32_1 = arith.constant 0 : i32
    return %c0_i32, %c0_i32_0 : i32, i32
  }
  func.func @transform_7(%arg0: i32) -> (i32, i32) {
    %c0_i32 = arith.constant 0 : i32
    %c0_i32_0 = arith.constant 0 : i32
    %c0_i32_1 = arith.constant 0 : i32
    return %c0_i32, %c0_i32_0 : i32, i32
  }
  func.func @transform_8(%arg0: i32) -> (i32, i32) {
    %c0_i32 = arith.constant 0 : i32
    %c0_i32_0 = arith.constant 0 : i32
    %c0_i32_1 = arith.constant 0 : i32
    return %c0_i32, %c0_i32_0 : i32, i32
  }
  func.func @transform_9(%arg0: i32) -> (i32, i32) {
    %c0_i32 = arith.constant 0 : i32
    %c0_i32_0 = arith.constant 0 : i32
    return %arg0, %c0_i32 : i32, i32
  }
}

</mosaic_0001>

<llo_original>
// kernel: tpu_custom_call.1
$region0: #{tpu_custom_call.1}
  #allocation0 [shape = 'u32[]', space=smem, size = 0x4, offset = 0x4, fixed_abs, tag = 'smem constant byte address 0x4 - core index']
  #allocation1 [shape = 'u32[144,128]{1,0:T(1,128)}', space=vmem, size = 0x12000, scoped, tag = 'internal scratch']
  #allocation14 [shape = 's32[]', space=sflag, size = 0x4, offset = 0, fixed_abs, tag = 'sflag constant byte address 0x0 - dummy sync flag']
  %s0 = inlined_call_operand.hbm [shape: bf16[4,32,512], index: 0, kind: input, shape index: {}]
  %s1 = inlined_call_operand.hbm [shape: f32[32,128], index: 1, kind: input, shape index: {}]
  %s2 = inlined_call_operand.hbm [shape: bf16[512,256], index: 2, kind: input, shape index: {}]
  %s3 = inlined_call_operand.hbm [shape: f32[128,256], index: 3, kind: input, shape index: {}]
  %s4 = inlined_call_operand.vmem [shape: f32[1,256], index: 4, kind: input, shape index: {}]
  %s5 = inlined_call_operand.hbm [shape: bf16[256,128], index: 5, kind: input, shape index: {}]
  %s6 = inlined_call_operand.vmem [shape: f32[1,128], index: 6, kind: input, shape index: {}]
  %s7 = inlined_call_operand.hbm [shape: bf16[128,128], index: 7, kind: input, shape index: {}]
  %s8 = inlined_call_operand.vmem [shape: f32[1,128], index: 8, kind: input, shape index: {}]
  %s9 = inlined_call_operand.hbm [shape: f32[32,128], index: 9, kind: output, shape index: {}]
  %s10 = sld [smem:[#allocation0]]
  $region93: #{tpu_custom_call.1} parent=0
    _
  %s12 = ssub.s32 1, %s10
  %s13 = scalar_select 0, %s12, %s10
  $region1: #{tpu_custom_call.1} parent=0
    #allocation2 [shape = 'u8[131072]{0}', space=vmem, size = 0x20000, scoped, tag = 'input window, operand 0']
    #allocation3 [shape = 's32[2]{0}', space=sflag, size = 0x8, scoped, tag = 'scoped memory for tpu_custom_call.1']
    #allocation4 [shape = 's32[2]{0}', space=sflag, size = 0x8, scoped, tag = 'scoped memory for tpu_custom_call.1']
    #allocation5 [shape = 'u8[16384]{0}', space=vmem, size = 0x4000, scoped, tag = 'input window, operand 1']
    #allocation6 [shape = 's32[2]{0}', space=sflag, size = 0x8, scoped, tag = 'scoped memory for tpu_custom_call.1']
    #allocation7 [shape = 'u8[262144]{0}', space=vmem, size = 0x40000, scoped, tag = 'input window, operand 2, single buffered']
    #allocation8 [shape = 'u8[131072]{0}', space=vmem, size = 0x20000, scoped, tag = 'input window, operand 3, single buffered']
    #allocation9 [shape = 's32[1]{0}', space=sflag, size = 0x4, scoped, tag = 'scoped memory for tpu_custom_call.1']
    #allocation10 [shape = 'u8[65536]{0}', space=vmem, size = 0x10000, scoped, tag = 'input window, operand 5, single buffered']
    #allocation11 [shape = 'u8[32768]{0}', space=vmem, size = 0x8000, scoped, tag = 'input window, operand 7, single buffered']
    #allocation12 [shape = 's32[1]{0}', space=sflag, size = 0x4, scoped, tag = 'scoped memory for tpu_custom_call.1']
    #allocation13 [shape = 'u8[16384]{0}', space=vmem, size = 0x4000, scoped, tag = 'output window, operand 0']
    %14 = vsyncpa [#allocation3], 0
    %s15 = scalar_lea.sflag [#allocation3], 1
    %16 = vsyncpa %s15, 0
    %17 = vsyncpa [#allocation6], 0
    %s18 = scalar_lea.sflag [#allocation6], 1
    %19 = vsyncpa %s18, 0
    %20 = vsyncpa [#allocation9], 0
    %21 = vsyncpa [#allocation12], 0
    %22 = vsyncpa [#allocation4], 0
    %s23 = scalar_lea.sflag [#allocation4], 1
    %24 = vsyncpa %s23, 0
    loop: start=0, step=1, limit=4
    $region2: #{tpu_custom_call.1} parent=1 // loop_pre_header
      _
    $region3: #{tpu_custom_call.1} parent=1 // loop_header
      %s26 = sphi 0, %s30
      %p27 = scmp.ge.s32.totalorder %s26, 4
      %s36 = sphi 0, %s38
      %s39 = sphi 0, %s36
      %s40 = sphi 0, %s39
      %s56 = sphi 0, %s40
      %s62 = sphi 0, %s64
      %s65 = sphi 0, %s62
      %s66 = sphi 0, %s65
      %s82 = sphi 0, %s66
      %s86 = sphi 0, %s86
      %s88 = sphi 0, %s86
      %s89 = sphi 0, %s88
      %s103 = sphi 0, %s89
      %s107 = sphi 0, %s107
      %s109 = sphi 0, %s107
      %s110 = sphi 0, %s109
      %s124 = sphi 0, %s110
      %s128 = sphi 0, %s128
      %s130 = sphi 0, %s128
      %s131 = sphi 0, %s130
      %s145 = sphi 0, %s131
      %s149 = sphi 0, %s149
      %s151 = sphi 0, %s149
      %s152 = sphi 0, %s151
      %s166 = sphi 0, %s152
      %s170 = sphi 0, %s170
      %s172 = sphi 0, %s170
      %s173 = sphi 0, %s172
      %s187 = sphi 0, %s173
      %s191 = sphi 0, %s191
      %s193 = sphi 0, %s191
      %s194 = sphi 0, %s193
      %s208 = sphi 0, %s194
      %s212 = sphi 0, %s212
      %s214 = sphi 0, %s212
      %s215 = sphi 0, %s214
      %s229 = sphi 0, %s215
      %s235 = sphi 0, %s237
      %s238 = sphi 0, %s235
      %s239 = sphi 0, %s238
      %s255 = sphi 0, %s239
    $region4: #{tpu_custom_call.1} parent=1 // loop_header_branch
      %29 = sbr.rel (%p27) target = $region8
    $region5: #{tpu_custom_call.1} parent=1 // loop_body
      %s31 = ssub.s32 %s26, 1
      %s32 = ssub.s32 %s26, 2
      %s33 = sadd.s32 %s26, 1
      %s34 = ssub.s32 %s26, %s33
      %p35 = scmp.eq.s32.totalorder %s34, 0
      %s37 = sadd.s32 %s36, 1
      %s38 = scalar_select %p35, %s36, %s37
      %p41 = pneg %p35
      %p42 = scmp.eq.s32.totalorder %s26, 1
      %p43 = por %p41, %p42
      %p44 = scmp.ne.s32.totalorder %s36, %s39
      %p45 = scmp.eq.s32.totalorder %s26, 0
      %p46 = por %p44, %p45
      %p47 = scmp.ne.s32.totalorder %s36, %s39
      %p48 = scmp.eq.s32.totalorder %s31, 1
      %p49 = por %p47, %p48
      %p50 = scmp.ne.s32.totalorder %s39, %s40
      %p51 = scmp.eq.s32.totalorder %s31, 0
      %p52 = por %p50, %p51
      %p53 = scmp.ne.s32.totalorder %s39, %s40
      %p54 = scmp.eq.s32.totalorder %s32, 1
      %p55 = por %p53, %p54
      %p57 = scmp.ne.s32.totalorder %s40, %s56
      %p58 = scmp.eq.s32.totalorder %s32, 0
      %p59 = por %p57, %p58
      %s60 = ssub.s32 %s26, %s33
      %p61 = scmp.eq.s32.totalorder %s60, 0
      %s63 = sadd.s32 %s62, 1
      %s64 = scalar_select %p61, %s62, %s63
      %p67 = pneg %p61
      %p68 = scmp.eq.s32.totalorder %s26, 1
      %p69 = por %p67, %p68
      %p70 = scmp.ne.s32.totalorder %s62, %s65
      %p71 = scmp.eq.s32.totalorder %s26, 0
      %p72 = por %p70, %p71
      %p73 = scmp.ne.s32.totalorder %s62, %s65
      %p74 = scmp.eq.s32.totalorder %s31, 1
      %p75 = por %p73, %p74
      %p76 = scmp.ne.s32.totalorder %s65, %s66
      %p77 = scmp.eq.s32.totalorder %s31, 0
      %p78 = por %p76, %p77
      %p79 = scmp.ne.s32.totalorder %s65, %s66
      %p80 = scmp.eq.s32.totalorder %s32, 1
      %p81 = por %p79, %p80
      %p83 = scmp.ne.s32.totalorder %s66, %s82
      %p84 = scmp.eq.s32.totalorder %s32, 0
      %p85 = por %p83, %p84
      %s87 = sadd.s32 %s86, 1
      %p90 = scmp.eq.s32.totalorder %s26, 1
      %p91 = scmp.ne.s32.totalorder %s86, %s88
      %p92 = scmp.eq.s32.totalorder %s26, 0
      %p93 = por %p91, %p92
      %p94 = scmp.ne.s32.totalorder %s86, %s88
      %p95 = scmp.eq.s32.totalorder %s31, 1
      %p96 = por %p94, %p95
      %p97 = scmp.ne.s32.totalorder %s88, %s89
      %p98 = scmp.eq.s32.totalorder %s31, 0
      %p99 = por %p97, %p98
      %p100 = scmp.ne.s32.totalorder %s88, %s89
      %p101 = scmp.eq.s32.totalorder %s32, 1
      %p102 = por %p100, %p101
      %p104 = scmp.ne.s32.totalorder %s89, %s103
      %p105 = scmp.eq.s32.totalorder %s32, 0
      %p106 = por %p104, %p105
      %s108 = sadd.s32 %s107, 1
      %p111 = scmp.eq.s32.totalorder %s26, 1
      %p112 = scmp.ne.s32.totalorder %s107, %s109
      %p113 = scmp.eq.s32.totalorder %s26, 0
      %p114 = por %p112, %p113
      %p115 = scmp.ne.s32.totalorder %s107, %s109
      %p116 = scmp.eq.s32.totalorder %s31, 1
      %p117 = por %p115, %p116
      %p118 = scmp.ne.s32.totalorder %s109, %s110
      %p119 = scmp.eq.s32.totalorder %s31, 0
      %p120 = por %p118, %p119
      %p121 = scmp.ne.s32.totalorder %s109, %s110
      %p122 = scmp.eq.s32.totalorder %s32, 1
      %p123 = por %p121, %p122
      %p125 = scmp.ne.s32.totalorder %s110, %s124
      %p126 = scmp.eq.s32.totalorder %s32, 0
      %p127 = por %p125, %p126
      %s129 = sadd.s32 %s128, 1
      %p132 = scmp.eq.s32.totalorder %s26, 1
      %p133 = scmp.ne.s32.totalorder %s128, %s130
      %p134 = scmp.eq.s32.totalorder %s26, 0
      %p135 = por %p133, %p134
      %p136 = scmp.ne.s32.totalorder %s128, %s130
      %p137 = scmp.eq.s32.totalorder %s31, 1
      %p138 = por %p136, %p137
      %p139 = scmp.ne.s32.totalorder %s130, %s131
      %p140 = scmp.eq.s32.totalorder %s31, 0
      %p141 = por %p139, %p140
      %p142 = scmp.ne.s32.totalorder %s130, %s131
      %p143 = scmp.eq.s32.totalorder %s32, 1
      %p144 = por %p142, %p143
      %p146 = scmp.ne.s32.totalorder %s131, %s145
      %p147 = scmp.eq.s32.totalorder %s32, 0
      %p148 = por %p146, %p147
      %s150 = sadd.s32 %s149, 1
      %p153 = scmp.eq.s32.totalorder %s26, 1
      %p154 = scmp.ne.s32.totalorder %s149, %s151
      %p155 = scmp.eq.s32.totalorder %s26, 0
      %p156 = por %p154, %p155
      %p157 = scmp.ne.s32.totalorder %s149, %s151
      %p158 = scmp.eq.s32.totalorder %s31, 1
      %p159 = por %p157, %p158
      %p160 = scmp.ne.s32.totalorder %s151, %s152
      %p161 = scmp.eq.s32.totalorder %s31, 0
      %p162 = por %p160, %p161
      %p163 = scmp.ne.s32.totalorder %s151, %s152
      %p164 = scmp.eq.s32.totalorder %s32, 1
      %p165 = por %p163, %p164
      %p167 = scmp.ne.s32.totalorder %s152, %s166
      %p168 = scmp.eq.s32.totalorder %s32, 0
      %p169 = por %p167, %p168
      %s171 = sadd.s32 %s170, 1
      %p174 = scmp.eq.s32.totalorder %s26, 1
      %p175 = scmp.ne.s32.totalorder %s170, %s172
      %p176 = scmp.eq.s32.totalorder %s26, 0
      %p177 = por %p175, %p176
      %p178 = scmp.ne.s32.totalorder %s170, %s172
      %p179 = scmp.eq.s32.totalorder %s31, 1
      %p180 = por %p178, %p179
      %p181 = scmp.ne.s32.totalorder %s172, %s173
      %p182 = scmp.eq.s32.totalorder %s31, 0
      %p183 = por %p181, %p182
      %p184 = scmp.ne.s32.totalorder %s172, %s173
      %p185 = scmp.eq.s32.totalorder %s32, 1
      %p186 = por %p184, %p185
      %p188 = scmp.ne.s32.totalorder %s173, %s187
      %p189 = scmp.eq.s32.totalorder %s32, 0
      %p190 = por %p188, %p189
      %s192 = sadd.s32 %s191, 1
      %p195 = scmp.eq.s32.totalorder %s26, 1
      %p196 = scmp.ne.s32.totalorder %s191, %s193
      %p197 = scmp.eq.s32.totalorder %s26, 0
      %p198 = por %p196, %p197
      %p199 = scmp.ne.s32.totalorder %s191, %s193
      %p200 = scmp.eq.s32.totalorder %s31, 1
      %p201 = por %p199, %p200
      %p202 = scmp.ne.s32.totalorder %s193, %s194
      %p203 = scmp.eq.s32.totalorder %s31, 0
      %p204 = por %p202, %p203
      %p205 = scmp.ne.s32.totalorder %s193, %s194
      %p206 = scmp.eq.s32.totalorder %s32, 1
      %p207 = por %p205, %p206
      %p209 = scmp.ne.s32.totalorder %s194, %s208
      %p210 = scmp.eq.s32.totalorder %s32, 0
      %p211 = por %p209, %p210
      %s213 = sadd.s32 %s212, 1
      %p216 = scmp.eq.s32.totalorder %s26, 1
      %p217 = scmp.ne.s32.totalorder %s212, %s214
      %p218 = scmp.eq.s32.totalorder %s26, 0
      %p219 = por %p217, %p218
      %p220 = scmp.ne.s32.totalorder %s212, %s214
      %p221 = scmp.eq.s32.totalorder %s31, 1
      %p222 = por %p220, %p221
      %p223 = scmp.ne.s32.totalorder %s214, %s215
      %p224 = scmp.eq.s32.totalorder %s31, 0
      %p225 = por %p223, %p224
      %p226 = scmp.ne.s32.totalorder %s214, %s215
      %p227 = scmp.eq.s32.totalorder %s32, 1
      %p228 = por %p226, %p227
      %p230 = scmp.ne.s32.totalorder %s215, %s229
      %p231 = scmp.eq.s32.totalorder %s32, 0
      %p232 = por %p230, %p231
      %s233 = ssub.s32 %s26, %s33
      %p234 = scmp.eq.s32.totalorder %s233, 0
      %s236 = sadd.s32 %s235, 1
      %s237 = scalar_select %p234, %s235, %s236
      %p240 = pneg %p234
      %p241 = scmp.eq.s32.totalorder %s26, 1
      %p242 = por %p240, %p241
      %p243 = scmp.ne.s32.totalorder %s235, %s238
      %p244 = scmp.eq.s32.totalorder %s26, 0
      %p245 = por %p243, %p244
      %p246 = scmp.ne.s32.totalorder %s235, %s238
      %p247 = scmp.eq.s32.totalorder %s31, 1
      %p248 = por %p246, %p247
      %p249 = scmp.ne.s32.totalorder %s238, %s239
      %p250 = scmp.eq.s32.totalorder %s31, 0
      %p251 = por %p249, %p250
      %p252 = scmp.ne.s32.totalorder %s238, %s239
      %p253 = scmp.eq.s32.totalorder %s32, 1
      %p254 = por %p252, %p253
      %p256 = scmp.ne.s32.totalorder %s239, %s255
      %p257 = scmp.eq.s32.totalorder %s32, 0
      %p258 = por %p256, %p257
      %p259 = scmp.le.s32.totalorder 1, %s26
      %p260 = scmp.lt.s32.totalorder %s26, 3
      %p261 = pnand %p259, %p260
      %p262 = pneg %p261
      // Predicated region
      $region9: #{tpu_custom_call.1} parent=5 // pred_check
        _
      $region10: #{tpu_custom_call.1} parent=5 // pred_check_branch
        %264 = sbr.rel (%p261) target = $region12
      $region11: #{tpu_custom_call.1} parent=5 // pred_region
        %s265 = ssub.s32 %s26, 1
        // Predicated region
        $region13: #{tpu_custom_call.1} parent=11 // pred_check
          %p266 = pneg %p99
        $region14: #{tpu_custom_call.1} parent=11 // pred_check_branch
          %268 = sbr.rel (%p266) target = $region16
        $region15: #{tpu_custom_call.1} parent=11 // pred_region
          %s270 = ssub.s32 8192, 8192
          %271 = vsyncadd [#allocation6], %s270
          %s272 = sshll.u32 [#allocation7], 4
          %s273 = int_to_ptr.vmem [resolvable:$true] %s272
          %278 = dma.hbm_to_vmem [thread:$0]  %s2, 8192, %s273, [#allocation6], 128, 128, 8
        $region16: #{tpu_custom_call.1} parent=11 // pred_fallthru
          _
        // Predicated region
        $region17: #{tpu_custom_call.1} parent=11 // pred_check
          %p279 = pneg %p120
        $region18: #{tpu_custom_call.1} parent=11 // pred_check_branch
          %281 = sbr.rel (%p279) target = $region20
        $region19: #{tpu_custom_call.1} parent=11 // pred_region
          %s283 = ssub.s32 4096, 4096
          %284 = vsyncadd [#allocation9], %s283
          %s285 = sshll.u32 [#allocation8], 4
          %s286 = int_to_ptr.vmem [resolvable:$true] %s285
          %291 = dma.hbm_to_vmem [thread:$0]  %s3, 4096, %s286, [#allocation9], 256, 256, 16
        $region20: #{tpu_custom_call.1} parent=11 // pred_fallthru
          _
        // Predicated region
        $region21: #{tpu_custom_call.1} parent=11 // pred_check
          %p292 = pneg %p141
        $region22: #{tpu_custom_call.1} parent=11 // pred_check_branch
          %294 = sbr.rel (%p292) target = $region24
        $region23: #{tpu_custom_call.1} parent=11 // pred_region
          _
        $region24: #{tpu_custom_call.1} parent=11 // pred_fallthru
          _
        // Predicated region
        $region25: #{tpu_custom_call.1} parent=11 // pred_check
          %p295 = pneg %p162
        $region26: #{tpu_custom_call.1} parent=11 // pred_check_branch
          %297 = sbr.rel (%p295) target = $region28
        $region27: #{tpu_custom_call.1} parent=11 // pred_region
          %s299 = ssub.s32 2048, 2048
          %300 = vsyncadd [#allocation9], %s299
          %s301 = sshll.u32 [#allocation10], 4
          %s302 = int_to_ptr.vmem [resolvable:$true] %s301
          %307 = dma.hbm_to_vmem [thread:$0]  %s5, 2048, %s302, [#allocation9], 64, 64, 4
        $region28: #{tpu_custom_call.1} parent=11 // pred_fallthru
          _
        // Predicated region
        $region29: #{tpu_custom_call.1} parent=11 // pred_check
          %p308 = pneg %p183
        $region30: #{tpu_custom_call.1} parent=11 // pred_check_branch
          %310 = sbr.rel (%p308) target = $region32
        $region31: #{tpu_custom_call.1} parent=11 // pred_region
          _
        $region32: #{tpu_custom_call.1} parent=11 // pred_fallthru
          _
        // Predicated region
        $region33: #{tpu_custom_call.1} parent=11 // pred_check
          %p311 = pneg %p204
        $region34: #{tpu_custom_call.1} parent=11 // pred_check_branch
          %313 = sbr.rel (%p311) target = $region36
        $region35: #{tpu_custom_call.1} parent=11 // pred_region
          %s315 = ssub.s32 1024, 1024
          %316 = vsyncadd [#allocation12], %s315
          %s317 = sshll.u32 [#allocation11], 4
          %s318 = int_to_ptr.vmem [resolvable:$true] %s317
          %323 = dma.hbm_to_vmem [thread:$0]  %s7, 1024, %s318, [#allocation12], 64, 64, 4
        $region36: #{tpu_custom_call.1} parent=11 // pred_fallthru
          _
        // Predicated region
        $region37: #{tpu_custom_call.1} parent=11 // pred_check
          %p324 = pneg %p225
        $region38: #{tpu_custom_call.1} parent=11 // pred_check_branch
          %326 = sbr.rel (%p324) target = $region40
        $region39: #{tpu_custom_call.1} parent=11 // pred_region
          _
        $region40: #{tpu_custom_call.1} parent=11 // pred_fallthru
          _
      $region12: #{tpu_custom_call.1} parent=5 // pred_fallthru
        _
      %p327 = scmp.lt.s32.totalorder %s26, 2
      // Predicated region
      $region41: #{tpu_custom_call.1} parent=5 // pred_check
        %p328 = pneg %p327
      $region42: #{tpu_custom_call.1} parent=5 // pred_check_branch
        %330 = sbr.rel (%p328) target = $region44
      $region43: #{tpu_custom_call.1} parent=5 // pred_region
        // Predicated region
        $region45: #{tpu_custom_call.1} parent=43 // pred_check
          %p331 = pneg %p46
        $region46: #{tpu_custom_call.1} parent=43 // pred_check_branch
          %333 = sbr.rel (%p331) target = $region48
        $region47: #{tpu_custom_call.1} parent=43 // pred_region
          #allocation15 [shape = 'u32[6]{0}', space=smem, size = 0x18, scoped, tag = 'DMA stride descriptor']
          %s334 = sand.u32 %s36, 1
          %s335 = scalar_lea.sflag [#allocation3], %s334
          %s336 = sand.u32 %s36, 1
          %s337 = smul.addr %s336, 128
          %s338 = scalar_lea.vmem [#allocation2], %s337
          %s339 = smul.u32 2, %s26
          %s341 = ssub.s32 2048, 2048
          %342 = vsyncadd %s335, %s341
          %s343 = smul.addr %s339, 4
          %s344 = smul.addr %s343, 64
          %s345 = scalar_lea.hbm %s0, %s344
          %s347 = sshll.u32 1, 14
          %s348 = sxor.u32 4294967295, %s347
          %s350 = sld [smem:[#allocation0]]
          %s351 = sadd.s32 2, %s350
          %s353 = sshll.u32 7, 26
          %s354 = sxor.u32 4294967295, %s353
          %s355 = sand.u32 0, %s354
          %s356 = sshll.u32 %s351, 26
          %s357 = sor.u32 %s355, %s356
          %s358 = sshll.u32 %s338, 4
          %s359 = int_to_ptr.vmem [resolvable:$true] %s358
          %365 = sst [smem:[#allocation15]] 1024
          %s366 = scalar_lea.smem [#allocation15], 1
          %367 = sst [smem:[%s366]] 512
          %s368 = scalar_lea.smem [#allocation15], 2
          %369 = sst [smem:[%s368]] 2
          %s370 = scalar_lea.smem [#allocation15], 3
          %371 = sst [smem:[%s370]] 256
          %s372 = scalar_lea.smem [#allocation15], 4
          %373 = sst [smem:[%s372]] 256
          %s374 = scalar_lea.smem [#allocation15], 5
          %375 = sst [smem:[%s374]] 16
          %377 = dma.general %s345, 2048, %s359, %s335, 131072, [#allocation15], %s357, 0
        $region48: #{tpu_custom_call.1} parent=43 // pred_fallthru
          _
        // Predicated region
        $region49: #{tpu_custom_call.1} parent=43 // pred_check
          %p378 = pneg %p72
        $region50: #{tpu_custom_call.1} parent=43 // pred_check_branch
          %380 = sbr.rel (%p378) target = $region52
        $region51: #{tpu_custom_call.1} parent=43 // pred_region
          %s381 = sand.u32 %s26, 1
          %s382 = scalar_lea.sflag [#allocation6], %s381
          %s383 = sand.u32 %s62, 1
          %s384 = smul.addr %s383, 16
          %s385 = scalar_lea.vmem [#allocation5], %s384
          %s386 = smul.u32 2, %s26
          %s388 = ssub.s32 256, 256
          %389 = vsyncadd %s382, %s388
          %s390 = smul.addr %s386, 128
          %s391 = scalar_lea.hbm %s1, %s390
          %s392 = sshll.u32 %s385, 4
          %s393 = int_to_ptr.vmem [resolvable:$true] %s392
          %398 = dma.hbm_to_vmem [thread:$0]  %s391, 256, %s393, %s382, 128, 128, 8
        $region52: #{tpu_custom_call.1} parent=43 // pred_fallthru
          _
      $region44: #{tpu_custom_call.1} parent=5 // pred_fallthru
        _
      %p399 = scmp.le.s32.totalorder 1, %s26
      %p400 = scmp.lt.s32.totalorder %s26, 3
      %p401 = pnand %p399, %p400
      %p402 = pneg %p401
      // Predicated region
      $region53: #{tpu_custom_call.1} parent=5 // pred_check
        _
      $region54: #{tpu_custom_call.1} parent=5 // pred_check_branch
        %404 = sbr.rel (%p401) target = $region56
      $region55: #{tpu_custom_call.1} parent=5 // pred_region
        %s405 = ssub.s32 %s26, 1
        %s406 = sand.u32 %s39, 1
        %s407 = scalar_lea.sflag [#allocation3], %s406
        %s408 = sand.u32 %s39, 1
        %s409 = smul.addr %s408, 128
        %s410 = scalar_lea.vmem [#allocation2], %s409
        // Predicated region
        $region57: #{tpu_custom_call.1} parent=55 // pred_check
          %p411 = pneg %p52
        $region58: #{tpu_custom_call.1} parent=55 // pred_check_branch
          %413 = sbr.rel (%p411) target = $region60
        $region59: #{tpu_custom_call.1} parent=55 // pred_region
          %414 = dma.done %s407, 2048
        $region60: #{tpu_custom_call.1} parent=55 // pred_fallthru
          _
        %s415 = sand.u32 %s31, 1
        %s416 = scalar_lea.sflag [#allocation6], %s415
        %s417 = sand.u32 %s65, 1
        %s418 = smul.addr %s417, 16
        %s419 = scalar_lea.vmem [#allocation5], %s418
        // Predicated region
        $region61: #{tpu_custom_call.1} parent=55 // pred_check
          %p420 = pneg %p78
        $region62: #{tpu_custom_call.1} parent=55 // pred_check_branch
          %422 = sbr.rel (%p420) target = $region64
        $region63: #{tpu_custom_call.1} parent=55 // pred_region
          %423 = dma.done %s416, 256
        $region64: #{tpu_custom_call.1} parent=55 // pred_fallthru
          _
        // Predicated region
        $region65: #{tpu_custom_call.1} parent=55 // pred_check
          %p424 = pneg %p99
        $region66: #{tpu_custom_call.1} parent=55 // pred_check_branch
          %426 = sbr.rel (%p424) target = $region68
        $region67: #{tpu_custom_call.1} parent=55 // pred_region
          %427 = dma.done [#allocation6], 8192
        $region68: #{tpu_custom_call.1} parent=55 // pred_fallthru
          _
        // Predicated region
        $region69: #{tpu_custom_call.1} parent=55 // pred_check
          %p428 = pneg %p120
        $region70: #{tpu_custom_call.1} parent=55 // pred_check_branch
          %430 = sbr.rel (%p428) target = $region72
        $region71: #{tpu_custom_call.1} parent=55 // pred_region
          %431 = dma.done [#allocation9], 4096
        $region72: #{tpu_custom_call.1} parent=55 // pred_fallthru
          _
        // Predicated region
        $region73: #{tpu_custom_call.1} parent=55 // pred_check
          %p432 = pneg %p162
        $region74: #{tpu_custom_call.1} parent=55 // pred_check_branch
          %434 = sbr.rel (%p432) target = $region76
        $region75: #{tpu_custom_call.1} parent=55 // pred_region
          %435 = dma.done [#allocation9], 2048
        $region76: #{tpu_custom_call.1} parent=55 // pred_fallthru
          _
        // Predicated region
        $region77: #{tpu_custom_call.1} parent=55 // pred_check
          %p436 = pneg %p204
        $region78: #{tpu_custom_call.1} parent=55 // pred_check_branch
          %438 = sbr.rel (%p436) target = $region80
        $region79: #{tpu_custom_call.1} parent=55 // pred_region
          %439 = dma.done [#allocation12], 1024
        $region80: #{tpu_custom_call.1} parent=55 // pred_fallthru
          _
        %s440 = sand.u32 %s39, 1
        %s441 = scalar_lea.sflag [#allocation3], %s440
        %s442 = sand.u32 %s39, 1
        %s443 = smul.addr %s442, 128
        %s444 = scalar_lea.vmem [#allocation2], %s443
        %p445 = pneg %p52
        %p446 = pneg %p49
        %s447 = sand.u32 %s31, 1
        %s448 = scalar_lea.sflag [#allocation6], %s447
        %s449 = sand.u32 %s65, 1
        %s450 = smul.addr %s449, 16
        %s451 = scalar_lea.vmem [#allocation5], %s450
        %p452 = pneg %p78
        %p453 = pneg %p75
        %p454 = pneg %p99
        %p455 = pneg %p96
        %p456 = pneg %p120
        %p457 = pneg %p117
        %p458 = pneg %p141
        %p459 = pneg %p138
        %p460 = pneg %p162
        %p461 = pneg %p159
        %p462 = pneg %p183
        %p463 = pneg %p180
        %p464 = pneg %p204
        %p465 = pneg %p201
        %p466 = pneg %p225
        %p467 = pneg %p222
        %p468 = pneg %p251
        %p469 = pneg %p248
        %s470 = sand.u32 %s238, 1
        %s471 = scalar_lea.sflag [#allocation4], %s470
        %s472 = sand.u32 %s238, 1
        %s473 = smul.addr %s472, 16
        %s474 = scalar_lea.vmem [#allocation13], %s473
        %s475 = smul.u32 2, %s31
        %s476 = smul.u32 2, %s31
        %s477 = smul.u32 2, %s31
        %v479 = vld [vmem:[%s410] sm:$0xff]
        %v480 = vld [vmem:[%s410 + $0x8] sm:$0xff]
        %v481 = vld [vmem:[%s410 + $0x10] sm:$0xff]
        %v482 = vld [vmem:[%s410 + $0x18] sm:$0xff]
        %v483 = vunpack.c.l.bf16 %v479
        %v484 = vunpack.c.h.bf16 %v479
        %v485 = vunpack.c.l.bf16 %v480
        %v486 = vunpack.c.h.bf16 %v480
        %v487 = vunpack.c.l.bf16 %v481
        %v488 = vunpack.c.h.bf16 %v481
        %v489 = vunpack.c.l.bf16 %v482
        %v490 = vunpack.c.h.bf16 %v482
        %v491 = vadd.f32 %v483, 0.0
        %v492 = vadd.f32 %v484, 0.0
        %v493 = vadd.f32 %v485, 0.0
        %v494 = vadd.f32 %v486, 0.0
        %v495 = vadd.f32 %v487, 0.0
        %v496 = vadd.f32 %v488, 0.0
        %v497 = vadd.f32 %v489, 0.0
        %v498 = vadd.f32 %v490, 0.0
        %s499 = scalar_lea.vmem %s410, 32 [#allocation2]
        %v500 = vld [vmem:[%s499] sm:$0xff]
        %v501 = vld [vmem:[%s499 + $0x8] sm:$0xff]
        %v502 = vld [vmem:[%s499 + $0x10] sm:$0xff]
        %v503 = vld [vmem:[%s499 + $0x18] sm:$0xff]
        %v504 = vunpack.c.l.bf16 %v500
        %v505 = vunpack.c.h.bf16 %v500
        %v506 = vunpack.c.l.bf16 %v501
        %v507 = vunpack.c.h.bf16 %v501
        %v508 = vunpack.c.l.bf16 %v502
        %v509 = vunpack.c.h.bf16 %v502
        %v510 = vunpack.c.l.bf16 %v503
        %v511 = vunpack.c.h.bf16 %v503
        %v512 = vadd.f32 %v491, %v504
        %v513 = vadd.f32 %v492, %v505
        %v514 = vadd.f32 %v493, %v506
        %v515 = vadd.f32 %v494, %v507
        %v516 = vadd.f32 %v495, %v508
        %v517 = vadd.f32 %v496, %v509
        %v518 = vadd.f32 %v497, %v510
        %v519 = vadd.f32 %v498, %v511
        %s520 = scalar_lea.vmem %s410, 64 [#allocation2]
        %v521 = vld [vmem:[%s520] sm:$0xff]
        %v522 = vld [vmem:[%s520 + $0x8] sm:$0xff]
        %v523 = vld [vmem:[%s520 + $0x10] sm:$0xff]
        %v524 = vld [vmem:[%s520 + $0x18] sm:$0xff]
        %v525 = vunpack.c.l.bf16 %v521
        %v526 = vunpack.c.h.bf16 %v521
        %v527 = vunpack.c.l.bf16 %v522
        %v528 = vunpack.c.h.bf16 %v522
        %v529 = vunpack.c.l.bf16 %v523
        %v530 = vunpack.c.h.bf16 %v523
        %v531 = vunpack.c.l.bf16 %v524
        %v532 = vunpack.c.h.bf16 %v524
        %v533 = vadd.f32 %v512, %v525
        %v534 = vadd.f32 %v513, %v526
        %v535 = vadd.f32 %v514, %v527
        %v536 = vadd.f32 %v515, %v528
        %v537 = vadd.f32 %v516, %v529
        %v538 = vadd.f32 %v517, %v530
        %v539 = vadd.f32 %v518, %v531
        %v540 = vadd.f32 %v519, %v532
        %s541 = scalar_lea.vmem %s410, 96 [#allocation2]
        %v542 = vld [vmem:[%s541] sm:$0xff]
        %v543 = vld [vmem:[%s541 + $0x8] sm:$0xff]
        %v544 = vld [vmem:[%s541 + $0x10] sm:$0xff]
        %v545 = vld [vmem:[%s541 + $0x18] sm:$0xff]
        %v546 = vunpack.c.l.bf16 %v542
        %v547 = vunpack.c.h.bf16 %v542
        %v548 = vunpack.c.l.bf16 %v543
        %v549 = vunpack.c.h.bf16 %v543
        %v550 = vunpack.c.l.bf16 %v544
        %v551 = vunpack.c.h.bf16 %v544
        %v552 = vunpack.c.l.bf16 %v545
        %v553 = vunpack.c.h.bf16 %v545
        %v554 = vadd.f32 %v533, %v546
        %v555 = vadd.f32 %v534, %v547
        %v556 = vadd.f32 %v535, %v548
        %v557 = vadd.f32 %v536, %v549
        %v558 = vadd.f32 %v537, %v550
        %v559 = vadd.f32 %v538, %v551
        %v560 = vadd.f32 %v539, %v552
        %v561 = vadd.f32 %v540, %v553
        %v562 = vmul.f32 %v554, 0.25
        %v563 = vmul.f32 %v555, 0.25
        %v564 = vmul.f32 %v556, 0.25
        %v565 = vmul.f32 %v557, 0.25
        %v566 = vmul.f32 %v558, 0.25
        %v567 = vmul.f32 %v559, 0.25
        %v568 = vmul.f32 %v560, 0.25
        %v569 = vmul.f32 %v561, 0.25
        %v570 = vpack.c.bf16 %v566, %v562
        %v571 = vpack.c.bf16 %v567, %v563
        %v572 = vpack.c.bf16 %v568, %v564
        %v573 = vpack.c.bf16 %v569, %v565
        %v574 = vld [vmem:[#allocation7] sm:$0xff]
        %v575 = vld [vmem:[#allocation7 + $0x8] sm:$0xff]
        %v576 = vld [vmem:[#allocation7 + $0x10] sm:$0xff]
        %v577 = vld [vmem:[#allocation7 + $0x18] sm:$0xff]
        %v578 = vld [vmem:[#allocation7 + $0x20] sm:$0xff]
        %v579 = vld [vmem:[#allocation7 + $0x28] sm:$0xff]
        %v580 = vld [vmem:[#allocation7 + $0x30] sm:$0xff]
        %v581 = vld [vmem:[#allocation7 + $0x38] sm:$0xff]
        %v582 = vld [vmem:[#allocation7 + $0x40] sm:$0xff]
        %v583 = vld [vmem:[#allocation7 + $0x48] sm:$0xff]
        %v584 = vld [vmem:[#allocation7 + $0x50] sm:$0xff]
        %v585 = vld [vmem:[#allocation7 + $0x58] sm:$0xff]
        %v586 = vld [vmem:[#allocation7 + $0x60] sm:$0xff]
        %v587 = vld [vmem:[#allocation7 + $0x68] sm:$0xff]
        %v588 = vld [vmem:[#allocation7 + $0x70] sm:$0xff]
        %v589 = vld [vmem:[#allocation7 + $0x78] sm:$0xff]
        %v590 = vld [vmem:[#allocation7 + $0x80] sm:$0xff]
        %v591 = vld [vmem:[#allocation7 + $0x88] sm:$0xff]
        %v592 = vld [vmem:[#allocation7 + $0x90] sm:$0xff]
        %v593 = vld [vmem:[#allocation7 + $0x98] sm:$0xff]
        %v594 = vld [vmem:[#allocation7 + $0xa0] sm:$0xff]
        %v595 = vld [vmem:[#allocation7 + $0xa8] sm:$0xff]
        %v596 = vld [vmem:[#allocation7 + $0xb0] sm:$0xff]
        %v597 = vld [vmem:[#allocation7 + $0xb8] sm:$0xff]
        %v598 = vld [vmem:[#allocation7 + $0xc0] sm:$0xff]
        %v599 = vld [vmem:[#allocation7 + $0xc8] sm:$0xff]
        %v600 = vld [vmem:[#allocation7 + $0xd0] sm:$0xff]
        %v601 = vld [vmem:[#allocation7 + $0xd8] sm:$0xff]
        %v602 = vld [vmem:[#allocation7 + $0xe0] sm:$0xff]
        %v603 = vld [vmem:[#allocation7 + $0xe8] sm:$0xff]
        %v604 = vld [vmem:[#allocation7 + $0xf0] sm:$0xff]
        %v605 = vld [vmem:[#allocation7 + $0xf8] sm:$0xff]
        %v606 = vld [vmem:[#allocation7 + $0x100] sm:$0xff]
        %v607 = vld [vmem:[#allocation7 + $0x108] sm:$0xff]
        %v608 = vld [vmem:[#allocation7 + $0x110] sm:$0xff]
        %v609 = vld [vmem:[#allocation7 + $0x118] sm:$0xff]
        %v610 = vld [vmem:[#allocation7 + $0x120] sm:$0xff]
        %v611 = vld [vmem:[#allocation7 + $0x128] sm:$0xff]
        %v612 = vld [vmem:[#allocation7 + $0x130] sm:$0xff]
        %v613 = vld [vmem:[#allocation7 + $0x138] sm:$0xff]
        %v614 = vld [vmem:[#allocation7 + $0x140] sm:$0xff]
        %v615 = vld [vmem:[#allocation7 + $0x148] sm:$0xff]
        %v616 = vld [vmem:[#allocation7 + $0x150] sm:$0xff]
        %v617 = vld [vmem:[#allocation7 + $0x158] sm:$0xff]
        %v618 = vld [vmem:[#allocation7 + $0x160] sm:$0xff]
        %v619 = vld [vmem:[#allocation7 + $0x168] sm:$0xff]
        %v620 = vld [vmem:[#allocation7 + $0x170] sm:$0xff]
        %v621 = vld [vmem:[#allocation7 + $0x178] sm:$0xff]
        %v622 = vld [vmem:[#allocation7 + $0x180] sm:$0xff]
        %v623 = vld [vmem:[#allocation7 + $0x188] sm:$0xff]
        %v624 = vld [vmem:[#allocation7 + $0x190] sm:$0xff]
        %v625 = vld [vmem:[#allocation7 + $0x198] sm:$0xff]
        %v626 = vld [vmem:[#allocation7 + $0x1a0] sm:$0xff]
        %v627 = vld [vmem:[#allocation7 + $0x1a8] sm:$0xff]
        %v628 = vld [vmem:[#allocation7 + $0x1b0] sm:$0xff]
        %v629 = vld [vmem:[#allocation7 + $0x1b8] sm:$0xff]
        %v630 = vld [vmem:[#allocation7 + $0x1c0] sm:$0xff]
        %v631 = vld [vmem:[#allocation7 + $0x1c8] sm:$0xff]
        %v632 = vld [vmem:[#allocation7 + $0x1d0] sm:$0xff]
        %v633 = vld [vmem:[#allocation7 + $0x1d8] sm:$0xff]
        %v634 = vld [vmem:[#allocation7 + $0x1e0] sm:$0xff]
        %v635 = vld [vmem:[#allocation7 + $0x1e8] sm:$0xff]
        %v636 = vld [vmem:[#allocation7 + $0x1f0] sm:$0xff]
        %v637 = vld [vmem:[#allocation7 + $0x1f8] sm:$0xff]
        %v638 = vld [vmem:[%s419] sm:$0xff]
        %v639 = vld [vmem:[%s419 + $0x8] sm:$0xff]
        %v640 = vld [vmem:[#allocation8] sm:$0xff]
        %v641 = vld [vmem:[#allocation8 + $0x8] sm:$0xff]
        %v642 = vld [vmem:[#allocation8 + $0x10] sm:$0xff]
        %v643 = vld [vmem:[#allocation8 + $0x18] sm:$0xff]
        %v644 = vld [vmem:[#allocation8 + $0x20] sm:$0xff]
        %v645 = vld [vmem:[#allocation8 + $0x28] sm:$0xff]
        %v646 = vld [vmem:[#allocation8 + $0x30] sm:$0xff]
        %v647 = vld [vmem:[#allocation8 + $0x38] sm:$0xff]
        %v648 = vld [vmem:[#allocation8 + $0x40] sm:$0xff]
        %v649 = vld [vmem:[#allocation8 + $0x48] sm:$0xff]
        %v650 = vld [vmem:[#allocation8 + $0x50] sm:$0xff]
        %v651 = vld [vmem:[#allocation8 + $0x58] sm:$0xff]
        %v652 = vld [vmem:[#allocation8 + $0x60] sm:$0xff]
        %v653 = vld [vmem:[#allocation8 + $0x68] sm:$0xff]
        %v654 = vld [vmem:[#allocation8 + $0x70] sm:$0xff]
        %v655 = vld [vmem:[#allocation8 + $0x78] sm:$0xff]
        %v656 = vld [vmem:[#allocation8 + $0x80] sm:$0xff]
        %v657 = vld [vmem:[#allocation8 + $0x88] sm:$0xff]
        %v658 = vld [vmem:[#allocation8 + $0x90] sm:$0xff]
        %v659 = vld [vmem:[#allocation8 + $0x98] sm:$0xff]
        %v660 = vld [vmem:[#allocation8 + $0xa0] sm:$0xff]
        %v661 = vld [vmem:[#allocation8 + $0xa8] sm:$0xff]
        %v662 = vld [vmem:[#allocation8 + $0xb0] sm:$0xff]
        %v663 = vld [vmem:[#allocation8 + $0xb8] sm:$0xff]
        %v664 = vld [vmem:[#allocation8 + $0xc0] sm:$0xff]
        %v665 = vld [vmem:[#allocation8 + $0xc8] sm:$0xff]
        %v666 = vld [vmem:[#allocation8 + $0xd0] sm:$0xff]
        %v667 = vld [vmem:[#allocation8 + $0xd8] sm:$0xff]
        %v668 = vld [vmem:[#allocation8 + $0xe0] sm:$0xff]
        %v669 = vld [vmem:[#allocation8 + $0xe8] sm:$0xff]
        %v670 = vld [vmem:[#allocation8 + $0xf0] sm:$0xff]
        %v671 = vld [vmem:[#allocation8 + $0xf8] sm:$0xff]
        %672 = vmatprep.subr.mxu0 %v671
        %673 = vmatpush1.msra.mxu0 %v670
        %674 = vmatprep.subr.mxu0 %v669
        %675 = vmatpush1.msra.mxu0 %v668
        %676 = vmatprep.subr.mxu0 %v667
        %677 = vmatpush1.msra.mxu0 %v666
        %678 = vmatprep.subr.mxu0 %v665
        %679 = vmatpush1.msra.mxu0 %v664
        %680 = vmatprep.subr.mxu0 %v663
        %681 = vmatpush1.msra.mxu0 %v662
        %682 = vmatprep.subr.mxu0 %v661
        %683 = vmatpush1.msra.mxu0 %v660
        %684 = vmatprep.subr.mxu0 %v659
        %685 = vmatpush1.msra.mxu0 %v658
        %686 = vmatprep.subr.mxu0 %v657
        %687 = vmatpush1.msra.mxu0 %v656
        %688 = vmatprep.subr.mxu0 %v655
        %689 = vmatpush1.msra.mxu0 %v654
        %690 = vmatprep.subr.mxu0 %v653
        %691 = vmatpush1.msra.mxu0 %v652
        %692 = vmatprep.subr.mxu0 %v651
        %693 = vmatpush1.msra.mxu0 %v650
        %694 = vmatprep.subr.mxu0 %v649
        %695 = vmatpush1.msra.mxu0 %v648
        %696 = vmatprep.subr.mxu0 %v647
        %697 = vmatpush1.msra.mxu0 %v646
        %698 = vmatprep.subr.mxu0 %v645
        %699 = vmatpush1.msra.mxu0 %v644
        %700 = vmatprep.subr.mxu0 %v643
        %701 = vmatpush1.msra.mxu0 %v642
        %702 = vmatprep.subr.mxu0 %v641
        %703 = vmatpush1.msra.mxu0 %v640
        %704 = vmatprep.subr.mxu0 0.0
        %705 = vmatpush2.msra.mxu0 0.0
        %706 = vmatprep.subr.mxu0 0.0
        %707 = vmatpush2.msra.mxu0 0.0
        %708 = vmatprep.subr.mxu0 0.0
        %709 = vmatpush2.msra.mxu0 0.0
        %710 = vmatprep.subr.mxu0 0.0
        %711 = vmatpush2.msra.mxu0 0.0
        %712 = vmatprep.subr.mxu0 0.0
        %713 = vmatpush2.msra.mxu0 0.0
        %714 = vmatprep.subr.mxu0 0.0
        %715 = vmatpush2.msra.mxu0 0.0
        %716 = vmatprep.subr.mxu0 0.0
        %717 = vmatpush2.msra.mxu0 0.0
        %718 = vmatprep.subr.mxu0 0.0
        %719 = vmatpush2.msra.mxu0 0.0
        %720 = vmatprep.subr.mxu0 0.0
        %721 = vmatpush2.msra.mxu0 0.0
        %722 = vmatprep.subr.mxu0 0.0
        %723 = vmatpush2.msra.mxu0 0.0
        %724 = vmatprep.subr.mxu0 0.0
        %725 = vmatpush2.msra.mxu0 0.0
        %726 = vmatprep.subr.mxu0 0.0
        %727 = vmatpush2.msra.mxu0 0.0
        %728 = vmatprep.subr.mxu0 0.0
        %729 = vmatpush2.msra.mxu0 0.0
        %730 = vmatprep.subr.mxu0 0.0
        %731 = vmatpush2.msra.mxu0 0.0
        %732 = vmatprep.subr.mxu0 0.0
        %733 = vmatpush2.msra.mxu0 0.0
        %734 = vmatprep.subr.mxu0 0.0
        %735 = vmatpush2.msra.mxu0 0.0
        %736 = vmatprep.mubr.f32.mxu0 0.0
        %737 = vmatmul.mubr.f32.gmra.mxu0 %v638
        %v738 = vpop.f32.mrf.mxu0
        %v739 = vadd.f32 0.0, %v738
        %v740 = vpop.f32.mrf.mxu0
        %v741 = vadd.f32 0.0, %v740
        %742 = vmatprep.mubr.f32.mxu0 0.0
        %743 = vmatmul.mubr.f32.gmra.mxu0 %v639
        %v744 = vpop.f32.mrf.mxu0
        %v745 = vadd.f32 0.0, %v744
        %v746 = vpop.f32.mrf.mxu0
        %v747 = vadd.f32 0.0, %v746
        %748 = vdwg.mxu0
        %v813 = vunpack.c.l.b16 %v574
        %v814 = vunpack.c.h.b16 %v574
        %v815 = vunpack.c.l.b16 %v575
        %v816 = vunpack.c.h.b16 %v575
        %v817 = vunpack.c.l.b16 %v576
        %v818 = vunpack.c.h.b16 %v576
        %v819 = vunpack.c.l.b16 %v577
        %v820 = vunpack.c.h.b16 %v577
        %v821 = vunpack.c.l.b16 %v578
        %v822 = vunpack.c.h.b16 %v578
        %v823 = vunpack.c.l.b16 %v579
        %v824 = vunpack.c.h.b16 %v579
        %v825 = vunpack.c.l.b16 %v580
        %v826 = vunpack.c.h.b16 %v580
        %v827 = vunpack.c.l.b16 %v581
        %v828 = vunpack.c.h.b16 %v581
        %v829 = vunpack.c.l.b16 %v582
        %v830 = vunpack.c.h.b16 %v582
        %v831 = vunpack.c.l.b16 %v583
        %v832 = vunpack.c.h.b16 %v583
        %v833 = vunpack.c.l.b16 %v584
        %v834 = vunpack.c.h.b16 %v584
        %v835 = vunpack.c.l.b16 %v585
        %v836 = vunpack.c.h.b16 %v585
        %v837 = vunpack.c.l.b16 %v586
        %v838 = vunpack.c.h.b16 %v586
        %v839 = vunpack.c.l.b16 %v587
        %v840 = vunpack.c.h.b16 %v587
        %v841 = vunpack.c.l.b16 %v588
        %v842 = vunpack.c.h.b16 %v588
        %v843 = vunpack.c.l.b16 %v589
        %v844 = vunpack.c.h.b16 %v589
        %v845 = vunpack.c.l.b16 %v590
        %v846 = vunpack.c.h.b16 %v590
        %v847 = vunpack.c.l.b16 %v591
        %v848 = vunpack.c.h.b16 %v591
        %v849 = vunpack.c.l.b16 %v592
        %v850 = vunpack.c.h.b16 %v592
        %v851 = vunpack.c.l.b16 %v593
        %v852 = vunpack.c.h.b16 %v593
        %v853 = vunpack.c.l.b16 %v594
        %v854 = vunpack.c.h.b16 %v594
        %v855 = vunpack.c.l.b16 %v595
        %v856 = vunpack.c.h.b16 %v595
        %v857 = vunpack.c.l.b16 %v596
        %v858 = vunpack.c.h.b16 %v596
        %v859 = vunpack.c.l.b16 %v597
        %v860 = vunpack.c.h.b16 %v597
        %v861 = vunpack.c.l.b16 %v598
        %v862 = vunpack.c.h.b16 %v598
        %v863 = vunpack.c.l.b16 %v599
        %v864 = vunpack.c.h.b16 %v599
        %v865 = vunpack.c.l.b16 %v600
        %v866 = vunpack.c.h.b16 %v600
        %v867 = vunpack.c.l.b16 %v601
        %v868 = vunpack.c.h.b16 %v601
        %v869 = vunpack.c.l.b16 %v602
        %v870 = vunpack.c.h.b16 %v602
        %v871 = vunpack.c.l.b16 %v603
        %v872 = vunpack.c.h.b16 %v603
        %v873 = vunpack.c.l.b16 %v604
        %v874 = vunpack.c.h.b16 %v604
        %v875 = vunpack.c.l.b16 %v605
        %v876 = vunpack.c.h.b16 %v605
        %v877 = vunpack.c.l.b16 %v606
        %v878 = vunpack.c.h.b16 %v606
        %v879 = vunpack.c.l.b16 %v607
        %v880 = vunpack.c.h.b16 %v607
        %v881 = vunpack.c.l.b16 %v608
        %v882 = vunpack.c.h.b16 %v608
        %v883 = vunpack.c.l.b16 %v609
        %v884 = vunpack.c.h.b16 %v609
        %v885 = vunpack.c.l.b16 %v610
        %v886 = vunpack.c.h.b16 %v610
        %v887 = vunpack.c.l.b16 %v611
        %v888 = vunpack.c.h.b16 %v611
        %v889 = vunpack.c.l.b16 %v612
        %v890 = vunpack.c.h.b16 %v612
        %v891 = vunpack.c.l.b16 %v613
        %v892 = vunpack.c.h.b16 %v613
        %v893 = vunpack.c.l.b16 %v614
        %v894 = vunpack.c.h.b16 %v614
        %v895 = vunpack.c.l.b16 %v615
        %v896 = vunpack.c.h.b16 %v615
        %v897 = vunpack.c.l.b16 %v616
        %v898 = vunpack.c.h.b16 %v616
        %v899 = vunpack.c.l.b16 %v617
        %v900 = vunpack.c.h.b16 %v617
        %v901 = vunpack.c.l.b16 %v618
        %v902 = vunpack.c.h.b16 %v618
        %v903 = vunpack.c.l.b16 %v619
        %v904 = vunpack.c.h.b16 %v619
        %v905 = vunpack.c.l.b16 %v620
        %v906 = vunpack.c.h.b16 %v620
        %v907 = vunpack.c.l.b16 %v621
        %v908 = vunpack.c.h.b16 %v621
        %v909 = vunpack.c.l.b16 %v622
        %v910 = vunpack.c.h.b16 %v622
        %v911 = vunpack.c.l.b16 %v623
        %v912 = vunpack.c.h.b16 %v623
        %v913 = vunpack.c.l.b16 %v624
        %v914 = vunpack.c.h.b16 %v624
        %v915 = vunpack.c.l.b16 %v625
        %v916 = vunpack.c.h.b16 %v625
        %v917 = vunpack.c.l.b16 %v626
        %v918 = vunpack.c.h.b16 %v626
        %v919 = vunpack.c.l.b16 %v627
        %v920 = vunpack.c.h.b16 %v627
        %v921 = vunpack.c.l.b16 %v628
        %v922 = vunpack.c.h.b16 %v628
        %v923 = vunpack.c.l.b16 %v629
        %v924 = vunpack.c.h.b16 %v629
        %v925 = vunpack.c.l.b16 %v630
        %v926 = vunpack.c.h.b16 %v630
        %v927 = vunpack.c.l.b16 %v631
        %v928 = vunpack.c.h.b16 %v631
        %v929 = vunpack.c.l.b16 %v632
        %v930 = vunpack.c.h.b16 %v632
        %v931 = vunpack.c.l.b16 %v633
        %v932 = vunpack.c.h.b16 %v633
        %v933 = vunpack.c.l.b16 %v634
        %v934 = vunpack.c.h.b16 %v634
        %v935 = vunpack.c.l.b16 %v635
        %v936 = vunpack.c.h.b16 %v635
        %v937 = vunpack.c.l.b16 %v636
        %v938 = vunpack.c.h.b16 %v636
        %v939 = vunpack.c.l.b16 %v637
        %v940 = vunpack.c.h.b16 %v637
        %v941 = vpack.c.b16 %v815, %v813
        %v942 = vpack.c.b16 %v816, %v814
        %v943 = vpack.c.b16 %v819, %v817
        %v944 = vpack.c.b16 %v820, %v818
        %v945 = vpack.c.b16 %v823, %v821
        %v946 = vpack.c.b16 %v824, %v822
        %v947 = vpack.c.b16 %v827, %v825
        %v948 = vpack.c.b16 %v828, %v826
        %v949 = vpack.c.b16 %v831, %v829
        %v950 = vpack.c.b16 %v832, %v830
        %v951 = vpack.c.b16 %v835, %v833
        %v952 = vpack.c.b16 %v836, %v834
        %v953 = vpack.c.b16 %v839, %v837
        %v954 = vpack.c.b16 %v840, %v838
        %v955 = vpack.c.b16 %v843, %v841
        %v956 = vpack.c.b16 %v844, %v842
        %v957 = vpack.c.b16 %v847, %v845
        %v958 = vpack.c.b16 %v848, %v846
        %v959 = vpack.c.b16 %v851, %v849
        %v960 = vpack.c.b16 %v852, %v850
        %v961 = vpack.c.b16 %v855, %v853
        %v962 = vpack.c.b16 %v856, %v854
        %v963 = vpack.c.b16 %v859, %v857
        %v964 = vpack.c.b16 %v860, %v858
        %v965 = vpack.c.b16 %v863, %v861
        %v966 = vpack.c.b16 %v864, %v862
        %v967 = vpack.c.b16 %v867, %v865
        %v968 = vpack.c.b16 %v868, %v866
        %v969 = vpack.c.b16 %v871, %v869
        %v970 = vpack.c.b16 %v872, %v870
        %v971 = vpack.c.b16 %v875, %v873
        %v972 = vpack.c.b16 %v876, %v874
        %v973 = vpack.c.b16 %v879, %v877
        %v974 = vpack.c.b16 %v880, %v878
        %v975 = vpack.c.b16 %v883, %v881
        %v976 = vpack.c.b16 %v884, %v882
        %v977 = vpack.c.b16 %v887, %v885
        %v978 = vpack.c.b16 %v888, %v886
        %v979 = vpack.c.b16 %v891, %v889
        %v980 = vpack.c.b16 %v892, %v890
        %v981 = vpack.c.b16 %v895, %v893
        %v982 = vpack.c.b16 %v896, %v894
        %v983 = vpack.c.b16 %v899, %v897
        %v984 = vpack.c.b16 %v900, %v898
        %v985 = vpack.c.b16 %v903, %v901
        %v986 = vpack.c.b16 %v904, %v902
        %v987 = vpack.c.b16 %v907, %v905
        %v988 = vpack.c.b16 %v908, %v906
        %v989 = vpack.c.b16 %v911, %v909
        %v990 = vpack.c.b16 %v912, %v910
        %v991 = vpack.c.b16 %v915, %v913
        %v992 = vpack.c.b16 %v916, %v914
        %v993 = vpack.c.b16 %v919, %v917
        %v994 = vpack.c.b16 %v920, %v918
        %v995 = vpack.c.b16 %v923, %v921
        %v996 = vpack.c.b16 %v924, %v922
        %v997 = vpack.c.b16 %v927, %v925
        %v998 = vpack.c.b16 %v928, %v926
        %v999 = vpack.c.b16 %v931, %v929
        %v1000 = vpack.c.b16 %v932, %v930
        %v1001 = vpack.c.b16 %v935, %v933
        %v1002 = vpack.c.b16 %v936, %v934
        %v1003 = vpack.c.b16 %v939, %v937
        %v1004 = vpack.c.b16 %v940, %v938
        %1069 = vmatprep.subr.bf16.mxu0 %v956
        %1070 = vmatpush1.bf16.msra.mxu0 %v955
        %1071 = vmatprep.subr.bf16.mxu0 %v954
        %1072 = vmatpush1.bf16.msra.mxu0 %v953
        %1073 = vmatprep.subr.bf16.mxu0 %v952
        %1074 = vmatpush1.bf16.msra.mxu0 %v951
        %1075 = vmatprep.subr.bf16.mxu0 %v950
        %1076 = vmatpush1.bf16.msra.mxu0 %v949
        %1077 = vmatprep.subr.bf16.mxu0 %v948
        %1078 = vmatpush1.bf16.msra.mxu0 %v947
        %1079 = vmatprep.subr.bf16.mxu0 %v946
        %1080 = vmatpush1.bf16.msra.mxu0 %v945
        %1081 = vmatprep.subr.bf16.mxu0 %v944
        %1082 = vmatpush1.bf16.msra.mxu0 %v943
        %1083 = vmatprep.subr.bf16.mxu0 %v942
        %1084 = vmatpush1.bf16.msra.mxu0 %v941
        %1085 = vmatprep.subr.bf16.mxu0 %v972
        %1086 = vmatpush2.bf16.msra.mxu0 %v971
        %1087 = vmatprep.subr.bf16.mxu0 %v970
        %1088 = vmatpush2.bf16.msra.mxu0 %v969
        %1089 = vmatprep.subr.bf16.mxu0 %v968
        %1090 = vmatpush2.bf16.msra.mxu0 %v967
        %1091 = vmatprep.subr.bf16.mxu0 %v966
        %1092 = vmatpush2.bf16.msra.mxu0 %v965
        %1093 = vmatprep.subr.bf16.mxu0 %v964
        %1094 = vmatpush2.bf16.msra.mxu0 %v963
        %1095 = vmatprep.subr.bf16.mxu0 %v962
        %1096 = vmatpush2.bf16.msra.mxu0 %v961
        %1097 = vmatprep.subr.bf16.mxu0 %v960
        %1098 = vmatpush2.bf16.msra.mxu0 %v959
        %1099 = vmatprep.subr.bf16.mxu0 %v958
        %1100 = vmatpush2.bf16.msra.mxu0 %v957
        %1101 = vmatprep.mubr.bf16.mxu0 %v571
        %1102 = vmatmul.mubr.bf16.gmra.mxu0 %v570
        %v1103 = vpop.f32.mrf.mxu0
        %v1104 = vadd.f32 %v739, %v1103
        %v1105 = vpop.f32.mrf.mxu0
        %v1106 = vadd.f32 %v741, %v1105
        %v1107 = vpop.f32.mrf.mxu0
        %v1108 = vadd.f32 %v745, %v1107
        %v1109 = vpop.f32.mrf.mxu0
        %v1110 = vadd.f32 %v747, %v1109
        %1111 = vdwg.mxu0
        %1112 = vmatprep.subr.bf16.mxu0 %v988
        %1113 = vmatpush1.bf16.msra.mxu0 %v987
        %1114 = vmatprep.subr.bf16.mxu0 %v986
        %1115 = vmatpush1.bf16.msra.mxu0 %v985
        %1116 = vmatprep.subr.bf16.mxu0 %v984
        %1117 = vmatpush1.bf16.msra.mxu0 %v983
        %1118 = vmatprep.subr.bf16.mxu0 %v982
        %1119 = vmatpush1.bf16.msra.mxu0 %v981
        %1120 = vmatprep.subr.bf16.mxu0 %v980
        %1121 = vmatpush1.bf16.msra.mxu0 %v979
        %1122 = vmatprep.subr.bf16.mxu0 %v978
        %1123 = vmatpush1.bf16.msra.mxu0 %v977
        %1124 = vmatprep.subr.bf16.mxu0 %v976
        %1125 = vmatpush1.bf16.msra.mxu0 %v975
        %1126 = vmatprep.subr.bf16.mxu0 %v974
        %1127 = vmatpush1.bf16.msra.mxu0 %v973
        %1128 = vmatprep.subr.bf16.mxu0 %v1004
        %1129 = vmatpush2.bf16.msra.mxu0 %v1003
        %1130 = vmatprep.subr.bf16.mxu0 %v1002
        %1131 = vmatpush2.bf16.msra.mxu0 %v1001
        %1132 = vmatprep.subr.bf16.mxu0 %v1000
        %1133 = vmatpush2.bf16.msra.mxu0 %v999
        %1134 = vmatprep.subr.bf16.mxu0 %v998
        %1135 = vmatpush2.bf16.msra.mxu0 %v997
        %1136 = vmatprep.subr.bf16.mxu0 %v996
        %1137 = vmatpush2.bf16.msra.mxu0 %v995
        %1138 = vmatprep.subr.bf16.mxu0 %v994
        %1139 = vmatpush2.bf16.msra.mxu0 %v993
        %1140 = vmatprep.subr.bf16.mxu0 %v992
        %1141 = vmatpush2.bf16.msra.mxu0 %v991
        %1142 = vmatprep.subr.bf16.mxu0 %v990
        %1143 = vmatpush2.bf16.msra.mxu0 %v989
        %1144 = vmatprep.mubr.bf16.mxu0 %v573
        %1145 = vmatmul.mubr.bf16.gmra.mxu0 %v572
        %v1146 = vpop.f32.mrf.mxu0
        %v1147 = vadd.f32 %v1104, %v1146
        %v1148 = vpop.f32.mrf.mxu0
        %v1149 = vadd.f32 %v1106, %v1148
        %v1150 = vpop.f32.mrf.mxu0
        %v1151 = vadd.f32 %v1108, %v1150
        %v1152 = vpop.f32.mrf.mxu0
        %v1153 = vadd.f32 %v1110, %v1152
        %1154 = vdwg.mxu0
        %v1155 = vld [vmem:[%s4] sm:$0x3]
        %v1157 = vlaneseq
        %v1158 = vshrl.u32 %v1157, 7
        %v1159 = vsub.s32 0, %v1158
        %v1160 = vrot.slane %v1155, %v1159
        %v1161 = vlaneseq
        %v1162 = vshrl.u32 %v1161, 7
        %v1163 = vsub.s32 1, %v1162
        %v1164 = vrot.slane %v1155, %v1163
        %v1167 = vadd.f32 %v1147, %v1160
        %v1168 = vadd.f32 %v1149, %v1164
        %v1169 = vadd.f32 %v1151, %v1160
        %v1170 = vadd.f32 %v1153, %v1164
        %v1171 = vmax.f32 %v1167, 0.0
        %v1172 = vmax.f32 %v1168, 0.0
        %v1173 = vmax.f32 %v1169, 0.0
        %v1174 = vmax.f32 %v1170, 0.0
        %v1175 = vpack.c.bf16 %v1173, %v1171
        %v1176 = vpack.c.bf16 %v1174, %v1172
        %v1177 = vld [vmem:[#allocation10] sm:$0xf]
        %v1178 = vld [vmem:[#allocation10 + $0x4] sm:$0xf]
        %v1179 = vld [vmem:[#allocation10 + $0x8] sm:$0xf]
        %v1180 = vld [vmem:[#allocation10 + $0xc] sm:$0xf]
        %v1181 = vld [vmem:[#allocation10 + $0x10] sm:$0xf]
        %v1182 = vld [vmem:[#allocation10 + $0x14] sm:$0xf]
        %v1183 = vld [vmem:[#allocation10 + $0x18] sm:$0xf]
        %v1184 = vld [vmem:[#allocation10 + $0x1c] sm:$0xf]
        %v1185 = vld [vmem:[#allocation10 + $0x20] sm:$0xf]
        %v1186 = vld [vmem:[#allocation10 + $0x24] sm:$0xf]
        %v1187 = vld [vmem:[#allocation10 + $0x28] sm:$0xf]
        %v1188 = vld [vmem:[#allocation10 + $0x2c] sm:$0xf]
        %v1189 = vld [vmem:[#allocation10 + $0x30] sm:$0xf]
        %v1190 = vld [vmem:[#allocation10 + $0x34] sm:$0xf]
        %v1191 = vld [vmem:[#allocation10 + $0x38] sm:$0xf]
        %v1192 = vld [vmem:[#allocation10 + $0x3c] sm:$0xf]
        %v1193 = vld [vmem:[#allocation10 + $0x40] sm:$0xf]
        %v1194 = vld [vmem:[#allocation10 + $0x44] sm:$0xf]
        %v1195 = vld [vmem:[#allocation10 + $0x48] sm:$0xf]
        %v1196 = vld [vmem:[#allocation10 + $0x4c] sm:$0xf]
        %v1197 = vld [vmem:[#allocation10 + $0x50] sm:$0xf]
        %v1198 = vld [vmem:[#allocation10 + $0x54] sm:$0xf]
        %v1199 = vld [vmem:[#allocation10 + $0x58] sm:$0xf]
        %v1200 = vld [vmem:[#allocation10 + $0x5c] sm:$0xf]
        %v1201 = vld [vmem:[#allocation10 + $0x60] sm:$0xf]
        %v1202 = vld [vmem:[#allocation10 + $0x64] sm:$0xf]
        %v1203 = vld [vmem:[#allocation10 + $0x68] sm:$0xf]
        %v1204 = vld [vmem:[#allocation10 + $0x6c] sm:$0xf]
        %v1205 = vld [vmem:[#allocation10 + $0x70] sm:$0xf]
        %v1206 = vld [vmem:[#allocation10 + $0x74] sm:$0xf]
        %v1207 = vld [vmem:[#allocation10 + $0x78] sm:$0xf]
        %v1208 = vld [vmem:[#allocation10 + $0x7c] sm:$0xf]
        %v1209 = vld [vmem:[%s6] sm:$0x1]
        %v1211 = vlaneseq
        %v1212 = vshrl.u32 %v1211, 7
        %v1213 = vsub.s32 0, %v1212
        %v1214 = vrot.slane %v1209, %v1213
        %v1248 = vunpack.c.l.b16 %v1177
        %v1249 = vunpack.c.l.b16 %v1178
        %v1250 = vunpack.c.l.b16 %v1179
        %v1251 = vunpack.c.l.b16 %v1180
        %v1252 = vunpack.c.l.b16 %v1181
        %v1253 = vunpack.c.l.b16 %v1182
        %v1254 = vunpack.c.l.b16 %v1183
        %v1255 = vunpack.c.l.b16 %v1184
        %v1256 = vunpack.c.l.b16 %v1185
        %v1257 = vunpack.c.l.b16 %v1186
        %v1258 = vunpack.c.l.b16 %v1187
        %v1259 = vunpack.c.l.b16 %v1188
        %v1260 = vunpack.c.l.b16 %v1189
        %v1261 = vunpack.c.l.b16 %v1190
        %v1262 = vunpack.c.l.b16 %v1191
        %v1263 = vunpack.c.l.b16 %v1192
        %v1264 = vunpack.c.l.b16 %v1193
        %v1265 = vunpack.c.l.b16 %v1194
        %v1266 = vunpack.c.l.b16 %v1195
        %v1267 = vunpack.c.l.b16 %v1196
        %v1268 = vunpack.c.l.b16 %v1197
        %v1269 = vunpack.c.l.b16 %v1198
        %v1270 = vunpack.c.l.b16 %v1199
        %v1271 = vunpack.c.l.b16 %v1200
        %v1272 = vunpack.c.l.b16 %v1201
        %v1273 = vunpack.c.l.b16 %v1202
        %v1274 = vunpack.c.l.b16 %v1203
        %v1275 = vunpack.c.l.b16 %v1204
        %v1276 = vunpack.c.l.b16 %v1205
        %v1277 = vunpack.c.l.b16 %v1206
        %v1278 = vunpack.c.l.b16 %v1207
        %v1279 = vunpack.c.l.b16 %v1208
        %v1280 = vpack.c.b16 %v1249, %v1248
        %v1281 = vpack.c.b16 %v1251, %v1250
        %v1282 = vpack.c.b16 %v1253, %v1252
        %v1283 = vpack.c.b16 %v1255, %v1254
        %v1284 = vpack.c.b16 %v1257, %v1256
        %v1285 = vpack.c.b16 %v1259, %v1258
        %v1286 = vpack.c.b16 %v1261, %v1260
        %v1287 = vpack.c.b16 %v1263, %v1262
        %v1288 = vpack.c.b16 %v1265, %v1264
        %v1289 = vpack.c.b16 %v1267, %v1266
        %v1290 = vpack.c.b16 %v1269, %v1268
        %v1291 = vpack.c.b16 %v1271, %v1270
        %v1292 = vpack.c.b16 %v1273, %v1272
        %v1293 = vpack.c.b16 %v1275, %v1274
        %v1294 = vpack.c.b16 %v1277, %v1276
        %v1295 = vpack.c.b16 %v1279, %v1278
        %1312 = vmatprep.subr.bf16.mxu0 0
        %1313 = vmatpush1.bf16.msra.mxu0 %v1287
        %1314 = vmatprep.subr.bf16.mxu0 0
        %1315 = vmatpush1.bf16.msra.mxu0 %v1286
        %1316 = vmatprep.subr.bf16.mxu0 0
        %1317 = vmatpush1.bf16.msra.mxu0 %v1285
        %1318 = vmatprep.subr.bf16.mxu0 0
        %1319 = vmatpush1.bf16.msra.mxu0 %v1284
        %1320 = vmatprep.subr.bf16.mxu0 0
        %1321 = vmatpush1.bf16.msra.mxu0 %v1283
        %1322 = vmatprep.subr.bf16.mxu0 0
        %1323 = vmatpush1.bf16.msra.mxu0 %v1282
        %1324 = vmatprep.subr.bf16.mxu0 0
        %1325 = vmatpush1.bf16.msra.mxu0 %v1281
        %1326 = vmatprep.subr.bf16.mxu0 0
        %1327 = vmatpush1.bf16.msra.mxu0 %v1280
        %1328 = vmatprep.subr.bf16.mxu0 0
        %1329 = vmatpush2.bf16.msra.mxu0 %v1295
        %1330 = vmatprep.subr.bf16.mxu0 0
        %1331 = vmatpush2.bf16.msra.mxu0 %v1294
        %1332 = vmatprep.subr.bf16.mxu0 0
        %1333 = vmatpush2.bf16.msra.mxu0 %v1293
        %1334 = vmatprep.subr.bf16.mxu0 0
        %1335 = vmatpush2.bf16.msra.mxu0 %v1292
        %1336 = vmatprep.subr.bf16.mxu0 0
        %1337 = vmatpush2.bf16.msra.mxu0 %v1291
        %1338 = vmatprep.subr.bf16.mxu0 0
        %1339 = vmatpush2.bf16.msra.mxu0 %v1290
        %1340 = vmatprep.subr.bf16.mxu0 0
        %1341 = vmatpush2.bf16.msra.mxu0 %v1289
        %1342 = vmatprep.subr.bf16.mxu0 0
        %1343 = vmatpush2.bf16.msra.mxu0 %v1288
        %1344 = vmatprep.mubr.bf16.mxu0 %v1176
        %1345 = vmatmul.mubr.bf16.gmra.mxu0 %v1175
        %v1346 = vpop.f32.mrf.mxu0
        %v1347 = vadd.f32 %v1214, %v1346
        %v1348 = vpop.f32.mrf.mxu0
        %v1349 = vpop.f32.mrf.mxu0
        %v1350 = vadd.f32 %v1214, %v1349
        %v1351 = vpop.f32.mrf.mxu0
        %1352 = vdwg.mxu0
        %v1353 = vmax.f32 %v1347, 0.0
        %v1354 = vmax.f32 %v1350, 0.0
        %v1355 = vpack.c.bf16 %v1354, %v1353
        %v1356 = vld [vmem:[#allocation11] sm:$0xf]
        %v1357 = vld [vmem:[#allocation11 + $0x4] sm:$0xf]
        %v1358 = vld [vmem:[#allocation11 + $0x8] sm:$0xf]
        %v1359 = vld [vmem:[#allocation11 + $0xc] sm:$0xf]
        %v1360 = vld [vmem:[#allocation11 + $0x10] sm:$0xf]
        %v1361 = vld [vmem:[#allocation11 + $0x14] sm:$0xf]
        %v1362 = vld [vmem:[#allocation11 + $0x18] sm:$0xf]
        %v1363 = vld [vmem:[#allocation11 + $0x1c] sm:$0xf]
        %v1364 = vld [vmem:[#allocation11 + $0x20] sm:$0xf]
        %v1365 = vld [vmem:[#allocation11 + $0x24] sm:$0xf]
        %v1366 = vld [vmem:[#allocation11 + $0x28] sm:$0xf]
        %v1367 = vld [vmem:[#allocation11 + $0x2c] sm:$0xf]
        %v1368 = vld [vmem:[#allocation11 + $0x30] sm:$0xf]
        %v1369 = vld [vmem:[#allocation11 + $0x34] sm:$0xf]
        %v1370 = vld [vmem:[#allocation11 + $0x38] sm:$0xf]
        %v1371 = vld [vmem:[#allocation11 + $0x3c] sm:$0xf]
        %v1372 = vld [vmem:[%s8] sm:$0x1]
        %v1374 = vlaneseq
        %v1375 = vshrl.u32 %v1374, 7
        %v1376 = vsub.s32 0, %v1375
        %v1377 = vrot.slane %v1372, %v1376
        %v1395 = vunpack.c.l.b16 %v1356
        %v1396 = vunpack.c.l.b16 %v1357
        %v1397 = vunpack.c.l.b16 %v1358
        %v1398 = vunpack.c.l.b16 %v1359
        %v1399 = vunpack.c.l.b16 %v1360
        %v1400 = vunpack.c.l.b16 %v1361
        %v1401 = vunpack.c.l.b16 %v1362
        %v1402 = vunpack.c.l.b16 %v1363
        %v1403 = vunpack.c.l.b16 %v1364
        %v1404 = vunpack.c.l.b16 %v1365
        %v1405 = vunpack.c.l.b16 %v1366
        %v1406 = vunpack.c.l.b16 %v1367
        %v1407 = vunpack.c.l.b16 %v1368
        %v1408 = vunpack.c.l.b16 %v1369
        %v1409 = vunpack.c.l.b16 %v1370
        %v1410 = vunpack.c.l.b16 %v1371
        %v1411 = vpack.c.b16 %v1396, %v1395
        %v1412 = vpack.c.b16 %v1398, %v1397
        %v1413 = vpack.c.b16 %v1400, %v1399
        %v1414 = vpack.c.b16 %v1402, %v1401
        %v1415 = vpack.c.b16 %v1404, %v1403
        %v1416 = vpack.c.b16 %v1406, %v1405
        %v1417 = vpack.c.b16 %v1408, %v1407
        %v1418 = vpack.c.b16 %v1410, %v1409
        %1427 = vmatprep.subr.bf16.mxu0 0
        %1428 = vmatpush1.bf16.msra.mxu0 %v1418
        %1429 = vmatprep.subr.bf16.mxu0 0
        %1430 = vmatpush1.bf16.msra.mxu0 %v1417
        %1431 = vmatprep.subr.bf16.mxu0 0
        %1432 = vmatpush1.bf16.msra.mxu0 %v1416
        %1433 = vmatprep.subr.bf16.mxu0 0
        %1434 = vmatpush1.bf16.msra.mxu0 %v1415
        %1435 = vmatprep.subr.bf16.mxu0 0
        %1436 = vmatpush1.bf16.msra.mxu0 %v1414
        %1437 = vmatprep.subr.bf16.mxu0 0
        %1438 = vmatpush1.bf16.msra.mxu0 %v1413
        %1439 = vmatprep.subr.bf16.mxu0 0
        %1440 = vmatpush1.bf16.msra.mxu0 %v1412
        %1441 = vmatprep.subr.bf16.mxu0 0
        %1442 = vmatpush1.bf16.msra.mxu0 %v1411
        %1443 = vmatprep.subr.bf16.mxu0 0
        %1444 = vmatpush2.bf16.msra.mxu0 0
        %1445 = vmatprep.subr.bf16.mxu0 0
        %1446 = vmatpush2.bf16.msra.mxu0 0
        %1447 = vmatprep.subr.bf16.mxu0 0
        %1448 = vmatpush2.bf16.msra.mxu0 0
        %1449 = vmatprep.subr.bf16.mxu0 0
        %1450 = vmatpush2.bf16.msra.mxu0 0
        %1451 = vmatprep.subr.bf16.mxu0 0
        %1452 = vmatpush2.bf16.msra.mxu0 0
        %1453 = vmatprep.subr.bf16.mxu0 0
        %1454 = vmatpush2.bf16.msra.mxu0 0
        %1455 = vmatprep.subr.bf16.mxu0 0
        %1456 = vmatpush2.bf16.msra.mxu0 0
        %1457 = vmatprep.subr.bf16.mxu0 0
        %1458 = vmatpush2.bf16.msra.mxu0 0
        %1459 = vmatprep.mubr.bf16.mxu0 0
        %1460 = vmatmul.mubr.bf16.gmra.mxu0 %v1355
        %v1461 = vpop.f32.mrf.mxu0
        %v1462 = vadd.f32 %v1377, %v1461
        %v1463 = vpop.f32.mrf.mxu0
        %v1464 = vpop.f32.mrf.mxu0
        %v1465 = vadd.f32 %v1377, %v1464
        %v1466 = vpop.f32.mrf.mxu0
        %1467 = vdwg.mxu0
        %1468 = vst [vmem:[%s474] sm:$0xff] %v1462
        %1469 = vst [vmem:[%s474 + $0x8] sm:$0xff] %v1465
        %s1470 = sand.u32 %s238, 1
        %s1471 = scalar_lea.sflag [#allocation4], %s1470
        %s1472 = sand.u32 %s238, 1
        %s1473 = smul.addr %s1472, 16
        %s1474 = scalar_lea.vmem [#allocation13], %s1473
        // Predicated region
        $region81: #{tpu_custom_call.1} parent=55 // pred_check
          %p1475 = pneg %p248
        $region82: #{tpu_custom_call.1} parent=55 // pred_check_branch
          %1477 = sbr.rel (%p1475) target = $region84
        $region83: #{tpu_custom_call.1} parent=55 // pred_region
          %s1478 = smul.u32 2, %s31
          %s1480 = ssub.s32 256, 256
          %1481 = vsyncadd %s1471, %s1480
          %s1482 = smul.addr %s1478, 128
          %s1483 = scalar_lea.hbm %s9, %s1482
          %s1484 = sshll.u32 %s1474, 4
          %s1485 = int_to_ptr.vmem [resolvable:$true] %s1484
          %1490 = dma.vmem_to_hbm [thread:$0]  %s1485, 256, %s1483, %s1471, 128, 128, 8
        $region84: #{tpu_custom_call.1} parent=55 // pred_fallthru
          _
      $region56: #{tpu_custom_call.1} parent=5 // pred_fallthru
        _
      %p1491 = scmp.le.s32.totalorder 2, %s26
      // Predicated region
      $region85: #{tpu_custom_call.1} parent=5 // pred_check
        %p1492 = pneg %p1491
      $region86: #{tpu_custom_call.1} parent=5 // pred_check_branch
        %1494 = sbr.rel (%p1492) target = $region88
      $region87: #{tpu_custom_call.1} parent=5 // pred_region
        %s1495 = ssub.s32 %s26, 2
        // Predicated region
        $region89: #{tpu_custom_call.1} parent=87 // pred_check
          %p1496 = pneg %p254
        $region90: #{tpu_custom_call.1} parent=87 // pred_check_branch
          %1498 = sbr.rel (%p1496) target = $region92
        $region91: #{tpu_custom_call.1} parent=87 // pred_region
          %s1499 = sand.u32 %s239, 1
          %s1500 = scalar_lea.sflag [#allocation4], %s1499
          %s1501 = sand.u32 %s239, 1
          %s1502 = smul.addr %s1501, 16
          %s1503 = scalar_lea.vmem [#allocation13], %s1502
          %1504 = dma.done %s1500, 256
        $region92: #{tpu_custom_call.1} parent=87 // pred_fallthru
          _
      $region88: #{tpu_custom_call.1} parent=5 // pred_fallthru
        _
    $region6: #{tpu_custom_call.1} parent=1 // loop_footer
      %s30 = sadd.s32 1, %s26
    $region7: #{tpu_custom_call.1} parent=1 // loop_footer_branch
      %25 = sbr.rel target = $region3
    $region8: #{tpu_custom_call.1} parent=1 // loop_exit
      _
    %1505 = vsyncpa [#allocation3], 1
    %s1506 = scalar_lea.sflag [#allocation3], 1
    %1507 = vsyncpa %s1506, 1
    %1508 = vsyncpa [#allocation6], 1
    %s1509 = scalar_lea.sflag [#allocation6], 1
    %1510 = vsyncpa %s1509, 1
    %1511 = vsyncpa [#allocation9], 1
    %1512 = vsyncpa [#allocation12], 1
    %1513 = vsyncpa [#allocation4], 1
    %s1514 = scalar_lea.sflag [#allocation4], 1
    %1515 = vsyncpa %s1514, 1

</llo_original>
